<compile_context>
chip_gen: v7x
topology: tpu7x:2x2x1
jax: 0.10.0
libtpu: 0.0.40
codegen_flags: <defaults>
</compile_context>

<pallas_src>
import functools

import jax
import jax.numpy as jnp
import numpy as np
from jax.experimental import pallas as pl
from jax.experimental.pallas import tpu as pltpu


CONFIG = dict(
    embedding_dim=20,        # E   (E % P != 0 -> exercises the pad path)
    padding_size=8,          # P   (patch size / conv kernel / conv stride)
    cnn_embedding_dim=8,     # C   (per-head dim)
    patch_attention_heads=4, # H
)

_LANE = 128          # TPU vreg lane width
_TOKEN_TILE = 1024   # target tokens per grid step (multiple of 128)
_MIN_SPLIT = 512     # never shrink a tile below this just to get >=2 steps


def _round_up(x, m):
    return (x + m - 1) // m * m


def _choose_token_tile(n_tokens):
    """Return (TB, steps).  TB is a multiple of 128; tokens are padded up to
    steps*TB in the wrapper, so TB need not divide the raw token count."""
    n_blocks = max(1, -(-n_tokens // _LANE))
    target_blocks = _TOKEN_TILE // _LANE
    min_split_blocks = _MIN_SPLIT // _LANE
    if n_blocks < 2 * min_split_blocks:
        steps = 1                                  # single TC friendly (v5e/v6e)
    else:
        steps = max(2, -(-n_blocks // target_blocks))   # >=2 steps for v7x megacore
    tb_blocks = -(-n_blocks // steps)
    return _LANE * tb_blocks, steps


# ----------------------------------------------------------------------------
# Pallas kernel: per-token patch attention, tokens on lanes, MXU-only reductions
# ----------------------------------------------------------------------------
def _patch_attention_kernel(x_ref, wproj_ref, smat_ref, eall_ref, wout_ref,
                            bout_ref, o_ref, *, n_patches, heads, head_dim,
                            nh_pad):
    # x_ref:     (E_pad+1, TB)  tokens on lanes; last feature row is all ones
    #                           (folds QKV biases into the projection matmul).
    # wproj_ref: (3*PAIRS*CH, E_pad+1)  [Q-rep; K-rep; V-rep] block-diag weights,
    #                           Q rows pre-scaled by 1/sqrt(E), bias last column.
    # smat_ref:  (N*nh_pad, PAIRS*CH)   0/1 row-sum matrix -> per-head scores.
    # eall_ref:  (N*CH, nh_pad)         0/1 expansion att(n,h) -> rows (n,h,c).
    # wout_ref:  (E, N*CH)              lin_output o lin_out composed affine map.
    # bout_ref:  (E, 1)
    # o_ref:     (E, TB)                lane-dense output tile.
    ch = heads * head_dim
    pairs = n_patches * n_patches
    rq = pairs * ch                     # rows per replicated Q / K / V slab
    nch = n_patches * ch

    x = x_ref[...]                                                  # (E_pad+1, TB)

    # One block-diagonal MXU matmul produces replicated Q, K and V for every
    # (query-patch, key-patch) pair of every token.
    proj = jnp.dot(wproj_ref[...], x, preferred_element_type=jnp.float32)
    q = proj[0:rq]                      # rows (n, m, h, c) -> Q of patch n
    k = proj[rq:2 * rq]                 # rows (n, m, h, c) -> K of patch m

    # 9 q.k products as one lane-dense VPU multiply; head_dim sums on the MXU
    # (removes all cross-sublane XLU reduces).
    prods = q * k                                                   # (rq, TB)
    scores = jnp.dot(smat_ref[...], prods,
                     preferred_element_type=jnp.float32)            # (N*nh_pad, TB)

    # Softmax over the N key patches: pure elementwise across N aligned slabs.
    s = [scores[m * nh_pad:(m + 1) * nh_pad] for m in range(n_patches)]
    smax = s[0]
    for m in range(1, n_patches):
        smax = jnp.maximum(smax, s[m])
    e = [jnp.exp(sm - smax) for sm in s]
    denom = e[0]
    for m in range(1, n_patches):
        denom = denom + e[m]
    inv_denom = pl.reciprocal(denom, approx=False)   # exact (fixes 5e-4 failure)

    # Context: expand att(n,h) over head_dim with a 0/1 MXU matmul, multiply by
    # the replicated V slab and accumulate (no concatenate, no broadcasts).
    eall = eall_ref[...]                                            # (nch, nh_pad)
    ctx = None
    for m in range(n_patches):
        att = e[m] * inv_denom                                      # (nh_pad, TB)
        attexp = jnp.dot(eall, att, preferred_element_type=jnp.float32)  # (nch, TB)
        vm = proj[2 * rq + m * nch: 2 * rq + (m + 1) * nch]         # V of patch m
        term = attexp * vm
        ctx = term if ctx is None else ctx + term                   # (nch, TB)

    # Fused lin_out -> lin_output: one lane-dense matmul + tiny bias add.
    out = jnp.dot(wout_ref[...], ctx, preferred_element_type=jnp.float32)
    o_ref[...] = (out + bout_ref[...]).astype(o_ref.dtype)


# ----------------------------------------------------------------------------
# One-time fused-weight construction (hoisted out of the per-call path)
# ----------------------------------------------------------------------------
def prepare_patch_attention(params, config):
    E = config['embedding_dim']
    P = config['padding_size']
    C = config['cnn_embedding_dim']
    H = config['patch_attention_heads']
    CH = C * H
    E_pad = _round_up(E, P)
    N = E_pad // P
    PAIRS = N * N
    NH_PAD = _round_up(N * H, 8)
    RQ = PAIRS * CH

    wq = np.asarray(params['wq'], np.float32); bq = np.asarray(params['bq'], np.float32)
    wk = np.asarray(params['wk'], np.float32); bk = np.asarray(params['bk'], np.float32)
    wv = np.asarray(params['wv'], np.float32); bv = np.asarray(params['bv'], np.float32)
    wlo = np.asarray(params['wlo'], np.float32); blo = np.asarray(params['blo'], np.float32)
    wout = np.asarray(params['wout'], np.float32); bout = np.asarray(params['bout'], np.float32)

    inv_scale = np.float32(1.0 / np.sqrt(np.float32(E)))   # torch: / sqrt(embedding_dim)
    wq_s = wq * inv_scale
    bq_s = bq * inv_scale

    # W_proj: [Q replicated per (n,m); K replicated per (n,m); V replicated per n],
    # block-diagonal over patches, bias folded into the last (ones-row) column.
    w_proj = np.zeros((3 * RQ, E_pad + 1), np.float32)
    for n in range(N):
        for m in range(N):
            p = n * N + m
            w_proj[p * CH:(p + 1) * CH, n * P:(n + 1) * P] = wq_s
            w_proj[p * CH:(p + 1) * CH, E_pad] = bq_s
            w_proj[RQ + p * CH:RQ + (p + 1) * CH, m * P:(m + 1) * P] = wk
            w_proj[RQ + p * CH:RQ + (p + 1) * CH, E_pad] = bk
            r0 = 2 * RQ + (m * N + n) * CH
            w_proj[r0:r0 + CH, m * P:(m + 1) * P] = wv
            w_proj[r0:r0 + CH, E_pad] = bv

    # S_mat: sums the head_dim entries of each (n,m,h) product block on the MXU.
    s_mat = np.zeros((N * NH_PAD, RQ), np.float32)
    for n in range(N):
        for m in range(N):
            for h in range(H):
                row = m * NH_PAD + n * H + h
                col = (n * N + m) * CH + h * C
                s_mat[row, col:col + C] = 1.0

    # E_all: expands att row (n,h) to rows (n,h,c) on the MXU.
    e_all = np.zeros((N * CH, NH_PAD), np.float32)
    for n in range(N):
        for h in range(H):
            for c in range(C):
                e_all[n * CH + h * C + c, n * H + h] = 1.0

    # lin_output o lin_out composed: out = W_fused @ ctx + b_fused.
    w_fused = np.concatenate([wout[:, n * P:(n + 1) * P] @ wlo for n in range(N)],
                             axis=1)                              # (E, N*CH)
    b_fused = (wout @ np.tile(blo, N) + bout).reshape(E, 1)

    return dict(w_proj=jnp.asarray(w_proj), s_mat=jnp.asarray(s_mat),
                e_all=jnp.asarray(e_all), w_fused=jnp.asarray(w_fused),
                b_fused=jnp.asarray(b_fused))


# ----------------------------------------------------------------------------
# Per-call wrapper (padding / layout glue only)
# ----------------------------------------------------------------------------
def cnn_patch_attention(x, prepared, config):
    E = config['embedding_dim']
    P = config['padding_size']
    C = config['cnn_embedding_dim']
    H = config['patch_attention_heads']
    CH = C * H

    bs, seq, _ = x.shape

    # Symmetric feature padding (same as the PyTorch module).
    if E % P != 0:
        pad_len = P - E % P
        pad_left = pad_len // 2
        x = jnp.pad(x, ((0, 0), (0, 0), (pad_left, pad_len - pad_left)))
    E_pad = x.shape[-1]
    N = E_pad // P
    NH_PAD = _round_up(N * H, 8)
    RQ = N * N * CH

    B = bs * seq
    TB, steps = _choose_token_tile(B)
    B_pad = TB * steps

    x2 = x.reshape(B, E_pad).astype(jnp.float32)
    x2 = jnp.pad(x2, ((0, B_pad - B), (0, 0)))
    # Ones column folds the QKV biases into the projection matmul, then flip to
    # (features, tokens) so the big token axis sits on vreg lanes.
    x_aug = jnp.concatenate([x2, jnp.ones((B_pad, 1), jnp.float32)], axis=1).T
    # TODO(synk): producer/consumer could adopt this (features, tokens) layout to
    # drop the two wrapper-side transposes (one extra HBM pass each way).

    kernel = functools.partial(_patch_attention_kernel, n_patches=N, heads=H,
                               head_dim=C, nh_pad=NH_PAD)

    grid_spec = pltpu.PrefetchScalarGridSpec(
        num_scalar_prefetch=0,
        grid=(steps,),
        in_specs=[
            pl.BlockSpec((E_pad + 1, TB), lambda i: (0, i)),          # x (feat, tok)
            pl.BlockSpec((3 * RQ, E_pad + 1), lambda i: (0, 0)),      # W_proj
            pl.BlockSpec((N * NH_PAD, RQ), lambda i: (0, 0)),         # S_mat
            pl.BlockSpec((N * CH, NH_PAD), lambda i: (0, 0)),         # E_all
            pl.BlockSpec((E, N * CH), lambda i: (0, 0)),              # W_fused
            pl.BlockSpec((E, 1), lambda i: (0, 0)),                   # b_fused
        ],
        out_specs=pl.BlockSpec((E, TB), lambda i: (0, i)),
    )

    out_t = pl.pallas_call(
        kernel,
        out_shape=jax.ShapeDtypeStruct((E, B_pad), jnp.float32),
        grid_spec=grid_spec,
        compiler_params=pltpu.CompilerParams(
            dimension_semantics=("parallel",),
            vmem_limit_bytes=48 * 1024 * 1024),   # ~12 MiB live at TB=1024 f32
    )(x_aug, prepared['w_proj'], prepared['s_mat'], prepared['e_all'],
      prepared['w_fused'], prepared['b_fused'])

    # (E, B_pad) -> (B, E) -> (bs, seq, E)
    return out_t.T[:B].reshape(bs, seq, E)


# ----------------------------------------------------------------------------
# Pure-JAX reference (mirrors the PyTorch forward exactly) for validation
# ----------------------------------------------------------------------------
def reference_forward(x, params, config):
    E = config['embedding_dim']
    P = config['padding_size']
    C = config['cnn_embedding_dim']
    H = config['patch_attention_heads']
    CH = C * H
    hp = jax.lax.Precision.HIGHEST

    bs, seq, _ = x.shape
    if E % P != 0:
        pad_len = P - E % P
        pad_left = pad_len // 2
        x = jnp.pad(x, ((0, 0), (0, 0), (pad_left, pad_len - pad_left)))
    E_pad = x.shape[-1]
    N = E_pad // P
    B = bs * seq
    xp = x.reshape(B, N, P).astype(jnp.float32)

    def proj(w, b):  # w: (CH, P) torch-style
        return jnp.einsum('bnp,cp->bnc', xp, w, precision=hp) + b

    Q = proj(params['wq'], params['bq']).reshape(B, N, H, C).transpose(0, 2, 1, 3)
    K = proj(params['wk'], params['bk']).reshape(B, N, H, C).transpose(0, 2, 1, 3)
    V = proj(params['wv'], params['bv']).reshape(B, N, H, C).transpose(0, 2, 1, 3)

    scale = jnp.sqrt(jnp.float32(E))
    att = jax.nn.softmax(
        jnp.einsum('bhnc,bhmc->bhnm', Q, K, precision=hp) / scale, axis=-1)
    ctx = jnp.einsum('bhnm,bhmc->bhnc', att, V, precision=hp)
    ctx = ctx.transpose(0, 2, 1, 3).reshape(B, N, CH)

    y = jnp.einsum('bnk,pk->bnp', ctx, params['wlo'], precision=hp) + params['blo']
    flat = y.reshape(B, E_pad)
    out = jnp.dot(flat, params['wout'].T, precision=hp) + params['bout']
    return out.reshape(bs, seq, E)


# ----------------------------------------------------------------------------
def init_params(key, config):
    E = config['embedding_dim']
    P = config['padding_size']
    C = config['cnn_embedding_dim']
    H = config['patch_attention_heads']
    CH = C * H
    E_pad = _round_up(E, P)

    ks = jax.random.split(key, 10)

    def uinit(k, shape, fan_in):
        bound = 1.0 / float(np.sqrt(fan_in))
        return jax.random.uniform(k, shape, jnp.float32, -bound, bound)

    return dict(
        # Conv1d(1, CH, kernel=P, stride=P) weight (CH,1,P) squeezed -> (CH,P)
        wq=uinit(ks[0], (CH, P), P), bq=uinit(ks[1], (CH,), P),
        wk=uinit(ks[2], (CH, P), P), bk=uinit(ks[3], (CH,), P),
        # V_Lin: Linear(P, CH)
        wv=uinit(ks[4], (CH, P), P), bv=uinit(ks[5], (CH,), P),
        # lin_out: Linear(CH, P)
        wlo=uinit(ks[6], (P, CH), CH), blo=uinit(ks[7], (P,), CH),
        # lin_output: Linear(E_pad, E)
        wout=uinit(ks[8], (E, E_pad), E_pad), bout=uinit(ks[9], (E,), E_pad),
    )


if __name__ == "__main__":
    key = jax.random.PRNGKey(0)
    kp, kx = jax.random.split(key)
    params = init_params(kp, CONFIG)

    # Fused / replicated weights built once per parameter set (hoisted).
    prepared = prepare_patch_attention(params, CONFIG)
    forward = jax.jit(functools.partial(cnn_patch_attention, config=CONFIG))

    def check(bs, seq, seed):
        xin = jax.random.normal(jax.random.PRNGKey(seed),
                                (bs, seq, CONFIG['embedding_dim']), jnp.float32)
        got = jax.block_until_ready(forward(xin, prepared))
        ref = reference_forward(xin, params, CONFIG)
        np.testing.assert_allclose(np.asarray(got), np.asarray(ref),
                                   rtol=5e-4, atol=5e-4)
        assert got.shape == (bs, seq, CONFIG['embedding_dim'])

    # Small shape from the module spec (E % P != 0, token padding, 1-step grid).
    check(2, 8, 0)
    # Previously failing shape: B=384 -> now a single 384-token step.
    check(4, 96, 1)
    # Larger shape: B=1280 -> 2 grid steps of 640 tokens (megacore "parallel").
    check(2, 640, 2)

    print("KERNEL_OK")
</pallas_src>

<mosaic_0001>
module attributes {stable_mosaic.version = 11 : i64} {
  func.func @_patch_attention_kernel(%arg0: i32, %arg1: memref<25x128xf32, #tpu.memory_space<vmem>>, %arg2: memref<864x25xf32, #tpu.memory_space<vmem>>, %arg3: memref<48x288xf32, #tpu.memory_space<vmem>>, %arg4: memref<96x16xf32, #tpu.memory_space<vmem>>, %arg5: memref<20x96xf32, #tpu.memory_space<vmem>>, %arg6: memref<20x1xf32, #tpu.memory_space<vmem>>, %arg7: memref<20x128xf32, #tpu.memory_space<vmem>>) attributes {dimension_semantics = [#tpu.dimension_semantics<parallel>], iteration_bounds = array<i64: 1>, scalar_prefetch = 0 : i64, scratch_operands = 0 : i64, tpu.core_type = #tpu.core_type<tc>, window_params = [{transform_indices = @transform_0, window_bounds = array<i64: 25, 128>}, {pipeline_mode = #tpu.pipeline_mode<synchronous>, transform_indices = @transform_1, window_bounds = array<i64: 864, 25>}, {pipeline_mode = #tpu.pipeline_mode<synchronous>, transform_indices = @transform_2, window_bounds = array<i64: 48, 288>}, {pipeline_mode = #tpu.pipeline_mode<synchronous>, transform_indices = @transform_3, window_bounds = array<i64: 96, 16>}, {pipeline_mode = #tpu.pipeline_mode<synchronous>, transform_indices = @transform_4, window_bounds = array<i64: 20, 96>}, {pipeline_mode = #tpu.pipeline_mode<synchronous>, transform_indices = @transform_5, window_bounds = array<i64: 20, 1>}, {transform_indices = @transform_6, window_bounds = array<i64: 20, 128>}]} {
    %c0 = arith.constant 0 : index
    %c0_0 = arith.constant 0 : index
    %0 = vector.load %arg1[%c0, %c0_0] : memref<25x128xf32, #tpu.memory_space<vmem>>, vector<25x128xf32>
    %c0_1 = arith.constant 0 : index
    %c0_2 = arith.constant 0 : index
    %1 = vector.load %arg2[%c0_1, %c0_2] : memref<864x25xf32, #tpu.memory_space<vmem>>, vector<864x25xf32>
    %cst = arith.constant dense<0.000000e+00> : vector<864x128xf32>
    %2 = tpu.matmul %1, %0, %cst {dimension_numbers = #tpu.dot_dimension_numbers<[1], [0], [0], [1], [0, 0, 1, 1], [], []>} : vector<864x25xf32>, vector<25x128xf32>, vector<864x128xf32> -> vector<864x128xf32>
    %3 = vector.extract_strided_slice %2 {offsets = [0, 0], sizes = [288, 128], strides = [1, 1]} : vector<864x128xf32> to vector<288x128xf32>
    %4 = vector.extract_strided_slice %2 {offsets = [288, 0], sizes = [288, 128], strides = [1, 1]} : vector<864x128xf32> to vector<288x128xf32>
    %5 = arith.mulf %3, %4 : vector<288x128xf32>
    %c0_3 = arith.constant 0 : index
    %c0_4 = arith.constant 0 : index
    %6 = vector.load %arg3[%c0_3, %c0_4] : memref<48x288xf32, #tpu.memory_space<vmem>>, vector<48x288xf32>
    %cst_5 = arith.constant dense<0.000000e+00> : vector<48x128xf32>
    %7 = tpu.matmul %6, %5, %cst_5 {dimension_numbers = #tpu.dot_dimension_numbers<[1], [0], [0], [1], [0, 0, 1, 1], [], []>} : vector<48x288xf32>, vector<288x128xf32>, vector<48x128xf32> -> vector<48x128xf32>
    %8 = vector.extract_strided_slice %7 {offsets = [0, 0], sizes = [16, 128], strides = [1, 1]} : vector<48x128xf32> to vector<16x128xf32>
    %9 = vector.extract_strided_slice %7 {offsets = [16, 0], sizes = [16, 128], strides = [1, 1]} : vector<48x128xf32> to vector<16x128xf32>
    %10 = vector.extract_strided_slice %7 {offsets = [32, 0], sizes = [16, 128], strides = [1, 1]} : vector<48x128xf32> to vector<16x128xf32>
    %11 = arith.maximumf %8, %9 : vector<16x128xf32>
    %12 = arith.maximumf %11, %10 : vector<16x128xf32>
    %13 = arith.subf %8, %12 : vector<16x128xf32>
    %14 = math.exp %13 : vector<16x128xf32>
    %15 = arith.subf %9, %12 : vector<16x128xf32>
    %16 = math.exp %15 : vector<16x128xf32>
    %17 = arith.subf %10, %12 : vector<16x128xf32>
    %18 = math.exp %17 : vector<16x128xf32>
    %19 = arith.addf %14, %16 : vector<16x128xf32>
    %20 = arith.addf %19, %18 : vector<16x128xf32>
    %21 = tpu.reciprocal %20 : vector<16x128xf32> -> vector<16x128xf32>
    %c0_6 = arith.constant 0 : index
    %c0_7 = arith.constant 0 : index
    %22 = vector.load %arg4[%c0_6, %c0_7] : memref<96x16xf32, #tpu.memory_space<vmem>>, vector<96x16xf32>
    %23 = arith.mulf %14, %21 : vector<16x128xf32>
    %cst_8 = arith.constant dense<0.000000e+00> : vector<96x128xf32>
    %24 = tpu.matmul %22, %23, %cst_8 {dimension_numbers = #tpu.dot_dimension_numbers<[1], [0], [0], [1], [0, 0, 1, 1], [], []>} : vector<96x16xf32>, vector<16x128xf32>, vector<96x128xf32> -> vector<96x128xf32>
    %25 = vector.extract_strided_slice %2 {offsets = [576, 0], sizes = [96, 128], strides = [1, 1]} : vector<864x128xf32> to vector<96x128xf32>
    %26 = arith.mulf %24, %25 : vector<96x128xf32>
    %27 = arith.mulf %16, %21 : vector<16x128xf32>
    %cst_9 = arith.constant dense<0.000000e+00> : vector<96x128xf32>
    %28 = tpu.matmul %22, %27, %cst_9 {dimension_numbers = #tpu.dot_dimension_numbers<[1], [0], [0], [1], [0, 0, 1, 1], [], []>} : vector<96x16xf32>, vector<16x128xf32>, vector<96x128xf32> -> vector<96x128xf32>
    %29 = vector.extract_strided_slice %2 {offsets = [672, 0], sizes = [96, 128], strides = [1, 1]} : vector<864x128xf32> to vector<96x128xf32>
    %30 = arith.mulf %28, %29 : vector<96x128xf32>
    %31 = arith.addf %26, %30 : vector<96x128xf32>
    %32 = arith.mulf %18, %21 : vector<16x128xf32>
    %cst_10 = arith.constant dense<0.000000e+00> : vector<96x128xf32>
    %33 = tpu.matmul %22, %32, %cst_10 {dimension_numbers = #tpu.dot_dimension_numbers<[1], [0], [0], [1], [0, 0, 1, 1], [], []>} : vector<96x16xf32>, vector<16x128xf32>, vector<96x128xf32> -> vector<96x128xf32>
    %34 = vector.extract_strided_slice %2 {offsets = [768, 0], sizes = [96, 128], strides = [1, 1]} : vector<864x128xf32> to vector<96x128xf32>
    %35 = arith.mulf %33, %34 : vector<96x128xf32>
    %36 = arith.addf %31, %35 : vector<96x128xf32>
    %c0_11 = arith.constant 0 : index
    %c0_12 = arith.constant 0 : index
    %37 = vector.load %arg5[%c0_11, %c0_12] : memref<20x96xf32, #tpu.memory_space<vmem>>, vector<20x96xf32>
    %cst_13 = arith.constant dense<0.000000e+00> : vector<20x128xf32>
    %38 = tpu.matmul %37, %36, %cst_13 {dimension_numbers = #tpu.dot_dimension_numbers<[1], [0], [0], [1], [0, 0, 1, 1], [], []>} : vector<20x96xf32>, vector<96x128xf32>, vector<20x128xf32> -> vector<20x128xf32>
    %c0_14 = arith.constant 0 : index
    %c0_15 = arith.constant 0 : index
    %39 = vector.load %arg6[%c0_14, %c0_15] : memref<20x1xf32, #tpu.memory_space<vmem>>, vector<20x1xf32>
    %40 = vector.broadcast %39 : vector<20x1xf32> to vector<20x128xf32>
    %41 = arith.addf %38, %40 : vector<20x128xf32>
    %c0_16 = arith.constant 0 : index
    %c0_17 = arith.constant 0 : index
    %42 = vector.load %arg7[%c0_16, %c0_17] : memref<20x128xf32, #tpu.memory_space<vmem>>, vector<20x128xf32>
    tpu.vector_store %arg7[%c0_16, %c0_17], %41 {strides = array<i32>} : memref<20x128xf32, #tpu.memory_space<vmem>>, vector<20x128xf32>,
    return
  }
  func.func @transform_0(%arg0: i32) -> (i32, i32) {
    %c0_i32 = arith.constant 0 : i32
    %c0_i32_0 = arith.constant 0 : i32
    return %c0_i32, %arg0 : i32, i32
  }
  func.func @transform_1(%arg0: i32) -> (i32, i32) {
    %c0_i32 = arith.constant 0 : i32
    %c0_i32_0 = arith.constant 0 : i32
    %c0_i32_1 = arith.constant 0 : i32
    return %c0_i32, %c0_i32_0 : i32, i32
  }
  func.func @transform_2(%arg0: i32) -> (i32, i32) {
    %c0_i32 = arith.constant 0 : i32
    %c0_i32_0 = arith.constant 0 : i32
    %c0_i32_1 = arith.constant 0 : i32
    return %c0_i32, %c0_i32_0 : i32, i32
  }
  func.func @transform_3(%arg0: i32) -> (i32, i32) {
    %c0_i32 = arith.constant 0 : i32
    %c0_i32_0 = arith.constant 0 : i32
    %c0_i32_1 = arith.constant 0 : i32
    return %c0_i32, %c0_i32_0 : i32, i32
  }
  func.func @transform_4(%arg0: i32) -> (i32, i32) {
    %c0_i32 = arith.constant 0 : i32
    %c0_i32_0 = arith.constant 0 : i32
    %c0_i32_1 = arith.constant 0 : i32
    return %c0_i32, %c0_i32_0 : i32, i32
  }
  func.func @transform_5(%arg0: i32) -> (i32, i32) {
    %c0_i32 = arith.constant 0 : i32
    %c0_i32_0 = arith.constant 0 : i32
    %c0_i32_1 = arith.constant 0 : i32
    return %c0_i32, %c0_i32_0 : i32, i32
  }
  func.func @transform_6(%arg0: i32) -> (i32, i32) {
    %c0_i32 = arith.constant 0 : i32
    %c0_i32_0 = arith.constant 0 : i32
    return %c0_i32, %arg0 : i32, i32
  }
}

</mosaic_0001>

<llo_original>
// kernel: cnn_patch_attention.1
$region0: #{cnn_patch_attention.1}
  #allocation0 [shape = 'u32[]', space=smem, size = 0x4, offset = 0x4, fixed_abs, tag = 'smem constant byte address 0x4 - core index']
  #allocation1 [shape = 'u32[144,128]{1,0:T(1,128)}', space=vmem, size = 0x12000, scoped, tag = 'internal scratch']
  %s0 = inlined_call_operand.vmem [shape: f32[25,128], index: 0, kind: input, shape index: {}]
  %s1 = inlined_call_operand.vmem [shape: f32[864,25], index: 1, kind: input, shape index: {}]
  %s2 = inlined_call_operand.vmem [shape: f32[48,288], index: 2, kind: input, shape index: {}]
  %s3 = inlined_call_operand.vmem [shape: f32[96,16], index: 3, kind: input, shape index: {}]
  %s4 = inlined_call_operand.vmem [shape: f32[20,96], index: 4, kind: input, shape index: {}]
  %s5 = inlined_call_operand.vmem [shape: f32[20,1], index: 5, kind: input, shape index: {}]
  %s6 = inlined_call_operand.vmem [shape: f32[20,128], index: 6, kind: output, shape index: {}]
  %s7 = sld [smem:[#allocation0]]
  $region34: #{cnn_patch_attention.1} parent=0
    _
  %s9 = ssub.s32 1, %s7
  %s10 = scalar_select 0, %s9, %s7
  // Predicated region
  $region2: #{cnn_patch_attention.1} parent=0 // pred_check
    _
  $region3: #{cnn_patch_attention.1} parent=0 // pred_check_branch
    %12 = sbr.rel (0) target = $region5
  $region4: #{cnn_patch_attention.1} parent=0 // pred_region
    _
  $region5: #{cnn_patch_attention.1} parent=0 // pred_fallthru
    _
  // Predicated region
  $region6: #{cnn_patch_attention.1} parent=0 // pred_check
    _
  $region7: #{cnn_patch_attention.1} parent=0 // pred_check_branch
    %14 = sbr.rel (0) target = $region9
  $region8: #{cnn_patch_attention.1} parent=0 // pred_region
    _
  $region9: #{cnn_patch_attention.1} parent=0 // pred_fallthru
    _
  // Predicated region
  $region10: #{cnn_patch_attention.1} parent=0 // pred_check
    _
  $region11: #{cnn_patch_attention.1} parent=0 // pred_check_branch
    %16 = sbr.rel (0) target = $region13
  $region12: #{cnn_patch_attention.1} parent=0 // pred_region
    _
  $region13: #{cnn_patch_attention.1} parent=0 // pred_fallthru
    _
  // Predicated region
  $region14: #{cnn_patch_attention.1} parent=0 // pred_check
    _
  $region15: #{cnn_patch_attention.1} parent=0 // pred_check_branch
    %18 = sbr.rel (0) target = $region17
  $region16: #{cnn_patch_attention.1} parent=0 // pred_region
    _
  $region17: #{cnn_patch_attention.1} parent=0 // pred_fallthru
    _
  // Predicated region
  $region18: #{cnn_patch_attention.1} parent=0 // pred_check
    _
  $region19: #{cnn_patch_attention.1} parent=0 // pred_check_branch
    %20 = sbr.rel (0) target = $region21
  $region20: #{cnn_patch_attention.1} parent=0 // pred_region
    _
  $region21: #{cnn_patch_attention.1} parent=0 // pred_fallthru
    _
  // Predicated region
  $region22: #{cnn_patch_attention.1} parent=0 // pred_check
    _
  $region23: #{cnn_patch_attention.1} parent=0 // pred_check_branch
    %22 = sbr.rel (0) target = $region25
  $region24: #{cnn_patch_attention.1} parent=0 // pred_region
    _
  $region25: #{cnn_patch_attention.1} parent=0 // pred_fallthru
    _
  %v23 = vld [vmem:[%s0] sm:$0xff]
  %v24 = vld [vmem:[%s0 + $0x8] sm:$0xff]
  %v25 = vld [vmem:[%s0 + $0x10] sm:$0xff]
  %v26 = vld [vmem:[%s0 + $0x18] sm:$0x1]
  %v27 = vld [vmem:[%s1] sm:$0xff]
  %v28 = vld [vmem:[%s1 + $0x8] sm:$0xff]
  %v29 = vld [vmem:[%s1 + $0x10] sm:$0xff]
  %v30 = vld [vmem:[%s1 + $0x18] sm:$0xff]
  %v31 = vld [vmem:[%s1 + $0x20] sm:$0xff]
  %v32 = vld [vmem:[%s1 + $0x28] sm:$0xff]
  %v33 = vld [vmem:[%s1 + $0x30] sm:$0xff]
  %v34 = vld [vmem:[%s1 + $0x38] sm:$0xff]
  %v35 = vld [vmem:[%s1 + $0x40] sm:$0xff]
  %v36 = vld [vmem:[%s1 + $0x48] sm:$0xff]
  %v37 = vld [vmem:[%s1 + $0x50] sm:$0xff]
  %v38 = vld [vmem:[%s1 + $0x58] sm:$0xff]
  %v39 = vld [vmem:[%s1 + $0x60] sm:$0xff]
  %v40 = vld [vmem:[%s1 + $0x68] sm:$0xff]
  %v41 = vld [vmem:[%s1 + $0x70] sm:$0xff]
  %v42 = vld [vmem:[%s1 + $0x78] sm:$0xff]
  %v43 = vld [vmem:[%s1 + $0x80] sm:$0xff]
  %v44 = vld [vmem:[%s1 + $0x88] sm:$0xff]
  %v45 = vld [vmem:[%s1 + $0x90] sm:$0xff]
  %v46 = vld [vmem:[%s1 + $0x98] sm:$0xff]
  %v47 = vld [vmem:[%s1 + $0xa0] sm:$0xff]
  %v48 = vld [vmem:[%s1 + $0xa8] sm:$0xff]
  %v49 = vld [vmem:[%s1 + $0xb0] sm:$0xff]
  %v50 = vld [vmem:[%s1 + $0xb8] sm:$0xff]
  %v51 = vld [vmem:[%s1 + $0xc0] sm:$0xff]
  %v52 = vld [vmem:[%s1 + $0xc8] sm:$0xff]
  %v53 = vld [vmem:[%s1 + $0xd0] sm:$0xff]
  %v54 = vld [vmem:[%s1 + $0xd8] sm:$0xff]
  %v55 = vld [vmem:[%s1 + $0xe0] sm:$0xff]
  %v56 = vld [vmem:[%s1 + $0xe8] sm:$0xff]
  %v57 = vld [vmem:[%s1 + $0xf0] sm:$0xff]
  %v58 = vld [vmem:[%s1 + $0xf8] sm:$0xff]
  %v59 = vld [vmem:[%s1 + $0x100] sm:$0xff]
  %v60 = vld [vmem:[%s1 + $0x108] sm:$0xff]
  %v61 = vld [vmem:[%s1 + $0x110] sm:$0xff]
  %v62 = vld [vmem:[%s1 + $0x118] sm:$0xff]
  %v63 = vld [vmem:[%s1 + $0x120] sm:$0xff]
  %v64 = vld [vmem:[%s1 + $0x128] sm:$0xff]
  %v65 = vld [vmem:[%s1 + $0x130] sm:$0xff]
  %v66 = vld [vmem:[%s1 + $0x138] sm:$0xff]
  %v67 = vld [vmem:[%s1 + $0x140] sm:$0xff]
  %v68 = vld [vmem:[%s1 + $0x148] sm:$0xff]
  %v69 = vld [vmem:[%s1 + $0x150] sm:$0xff]
  %v70 = vld [vmem:[%s1 + $0x158] sm:$0xff]
  %v71 = vld [vmem:[%s1 + $0x160] sm:$0xff]
  %v72 = vld [vmem:[%s1 + $0x168] sm:$0xff]
  %v73 = vld [vmem:[%s1 + $0x170] sm:$0xff]
  %v74 = vld [vmem:[%s1 + $0x178] sm:$0xff]
  %v75 = vld [vmem:[%s1 + $0x180] sm:$0xff]
  %v76 = vld [vmem:[%s1 + $0x188] sm:$0xff]
  %v77 = vld [vmem:[%s1 + $0x190] sm:$0xff]
  %v78 = vld [vmem:[%s1 + $0x198] sm:$0xff]
  %v79 = vld [vmem:[%s1 + $0x1a0] sm:$0xff]
  %v80 = vld [vmem:[%s1 + $0x1a8] sm:$0xff]
  %v81 = vld [vmem:[%s1 + $0x1b0] sm:$0xff]
  %v82 = vld [vmem:[%s1 + $0x1b8] sm:$0xff]
  %v83 = vld [vmem:[%s1 + $0x1c0] sm:$0xff]
  %v84 = vld [vmem:[%s1 + $0x1c8] sm:$0xff]
  %v85 = vld [vmem:[%s1 + $0x1d0] sm:$0xff]
  %v86 = vld [vmem:[%s1 + $0x1d8] sm:$0xff]
  %v87 = vld [vmem:[%s1 + $0x1e0] sm:$0xff]
  %v88 = vld [vmem:[%s1 + $0x1e8] sm:$0xff]
  %v89 = vld [vmem:[%s1 + $0x1f0] sm:$0xff]
  %v90 = vld [vmem:[%s1 + $0x1f8] sm:$0xff]
  %v91 = vld [vmem:[%s1 + $0x200] sm:$0xff]
  %v92 = vld [vmem:[%s1 + $0x208] sm:$0xff]
  %v93 = vld [vmem:[%s1 + $0x210] sm:$0xff]
  %v94 = vld [vmem:[%s1 + $0x218] sm:$0xff]
  %v95 = vld [vmem:[%s1 + $0x220] sm:$0xff]
  %v96 = vld [vmem:[%s1 + $0x228] sm:$0xff]
  %v97 = vld [vmem:[%s1 + $0x230] sm:$0xff]
  %v98 = vld [vmem:[%s1 + $0x238] sm:$0xff]
  %v99 = vld [vmem:[%s1 + $0x240] sm:$0xff]
  %v100 = vld [vmem:[%s1 + $0x248] sm:$0xff]
  %v101 = vld [vmem:[%s1 + $0x250] sm:$0xff]
  %v102 = vld [vmem:[%s1 + $0x258] sm:$0xff]
  %v103 = vld [vmem:[%s1 + $0x260] sm:$0xff]
  %v104 = vld [vmem:[%s1 + $0x268] sm:$0xff]
  %v105 = vld [vmem:[%s1 + $0x270] sm:$0xff]
  %v106 = vld [vmem:[%s1 + $0x278] sm:$0xff]
  %v107 = vld [vmem:[%s1 + $0x280] sm:$0xff]
  %v108 = vld [vmem:[%s1 + $0x288] sm:$0xff]
  %v109 = vld [vmem:[%s1 + $0x290] sm:$0xff]
  %v110 = vld [vmem:[%s1 + $0x298] sm:$0xff]
  %v111 = vld [vmem:[%s1 + $0x2a0] sm:$0xff]
  %v112 = vld [vmem:[%s1 + $0x2a8] sm:$0xff]
  %v113 = vld [vmem:[%s1 + $0x2b0] sm:$0xff]
  %v114 = vld [vmem:[%s1 + $0x2b8] sm:$0xff]
  %v115 = vld [vmem:[%s1 + $0x2c0] sm:$0xff]
  %v116 = vld [vmem:[%s1 + $0x2c8] sm:$0xff]
  %v117 = vld [vmem:[%s1 + $0x2d0] sm:$0xff]
  %v118 = vld [vmem:[%s1 + $0x2d8] sm:$0xff]
  %v119 = vld [vmem:[%s1 + $0x2e0] sm:$0xff]
  %v120 = vld [vmem:[%s1 + $0x2e8] sm:$0xff]
  %v121 = vld [vmem:[%s1 + $0x2f0] sm:$0xff]
  %v122 = vld [vmem:[%s1 + $0x2f8] sm:$0xff]
  %v123 = vld [vmem:[%s1 + $0x300] sm:$0xff]
  %v124 = vld [vmem:[%s1 + $0x308] sm:$0xff]
  %v125 = vld [vmem:[%s1 + $0x310] sm:$0xff]
  %v126 = vld [vmem:[%s1 + $0x318] sm:$0xff]
  %v127 = vld [vmem:[%s1 + $0x320] sm:$0xff]
  %v128 = vld [vmem:[%s1 + $0x328] sm:$0xff]
  %v129 = vld [vmem:[%s1 + $0x330] sm:$0xff]
  %v130 = vld [vmem:[%s1 + $0x338] sm:$0xff]
  %v131 = vld [vmem:[%s1 + $0x340] sm:$0xff]
  %v132 = vld [vmem:[%s1 + $0x348] sm:$0xff]
  %v133 = vld [vmem:[%s1 + $0x350] sm:$0xff]
  %v134 = vld [vmem:[%s1 + $0x358] sm:$0xff]
  %vm135 = vcmask 203776
  %v137 = vsel %vm135, %v27, 0
  %v140 = vsel %vm135, %v28, 0
  %v143 = vsel %vm135, %v29, 0
  %v146 = vsel %vm135, %v30, 0
  %v149 = vsel %vm135, %v31, 0
  %v152 = vsel %vm135, %v32, 0
  %v155 = vsel %vm135, %v33, 0
  %v158 = vsel %vm135, %v34, 0
  %v161 = vsel %vm135, %v35, 0
  %v164 = vsel %vm135, %v36, 0
  %v167 = vsel %vm135, %v37, 0
  %v170 = vsel %vm135, %v38, 0
  %v173 = vsel %vm135, %v39, 0
  %v176 = vsel %vm135, %v40, 0
  %v179 = vsel %vm135, %v41, 0
  %v182 = vsel %vm135, %v42, 0
  %v185 = vsel %vm135, %v43, 0
  %v188 = vsel %vm135, %v44, 0
  %v191 = vsel %vm135, %v45, 0
  %v194 = vsel %vm135, %v46, 0
  %v197 = vsel %vm135, %v47, 0
  %v200 = vsel %vm135, %v48, 0
  %v203 = vsel %vm135, %v49, 0
  %v206 = vsel %vm135, %v50, 0
  %v209 = vsel %vm135, %v51, 0
  %v212 = vsel %vm135, %v52, 0
  %v215 = vsel %vm135, %v53, 0
  %v218 = vsel %vm135, %v54, 0
  %v221 = vsel %vm135, %v55, 0
  %v224 = vsel %vm135, %v56, 0
  %v227 = vsel %vm135, %v57, 0
  %v230 = vsel %vm135, %v58, 0
  %v233 = vsel %vm135, %v59, 0
  %v236 = vsel %vm135, %v60, 0
  %v239 = vsel %vm135, %v61, 0
  %v242 = vsel %vm135, %v62, 0
  %v245 = vsel %vm135, %v63, 0
  %v248 = vsel %vm135, %v64, 0
  %v251 = vsel %vm135, %v65, 0
  %v254 = vsel %vm135, %v66, 0
  %v257 = vsel %vm135, %v67, 0
  %v260 = vsel %vm135, %v68, 0
  %v263 = vsel %vm135, %v69, 0
  %v266 = vsel %vm135, %v70, 0
  %v269 = vsel %vm135, %v71, 0
  %v272 = vsel %vm135, %v72, 0
  %v275 = vsel %vm135, %v73, 0
  %v278 = vsel %vm135, %v74, 0
  %v281 = vsel %vm135, %v75, 0
  %v284 = vsel %vm135, %v76, 0
  %v287 = vsel %vm135, %v77, 0
  %v290 = vsel %vm135, %v78, 0
  %v293 = vsel %vm135, %v79, 0
  %v296 = vsel %vm135, %v80, 0
  %v299 = vsel %vm135, %v81, 0
  %v302 = vsel %vm135, %v82, 0
  %v305 = vsel %vm135, %v83, 0
  %v308 = vsel %vm135, %v84, 0
  %v311 = vsel %vm135, %v85, 0
  %v314 = vsel %vm135, %v86, 0
  %v317 = vsel %vm135, %v87, 0
  %v320 = vsel %vm135, %v88, 0
  %v323 = vsel %vm135, %v89, 0
  %v326 = vsel %vm135, %v90, 0
  %v329 = vsel %vm135, %v91, 0
  %v332 = vsel %vm135, %v92, 0
  %v335 = vsel %vm135, %v93, 0
  %v338 = vsel %vm135, %v94, 0
  %v341 = vsel %vm135, %v95, 0
  %v344 = vsel %vm135, %v96, 0
  %v347 = vsel %vm135, %v97, 0
  %v350 = vsel %vm135, %v98, 0
  %v353 = vsel %vm135, %v99, 0
  %v356 = vsel %vm135, %v100, 0
  %v359 = vsel %vm135, %v101, 0
  %v362 = vsel %vm135, %v102, 0
  %v365 = vsel %vm135, %v103, 0
  %v368 = vsel %vm135, %v104, 0
  %v371 = vsel %vm135, %v105, 0
  %v374 = vsel %vm135, %v106, 0
  %v377 = vsel %vm135, %v107, 0
  %v380 = vsel %vm135, %v108, 0
  %v383 = vsel %vm135, %v109, 0
  %v386 = vsel %vm135, %v110, 0
  %v389 = vsel %vm135, %v111, 0
  %v392 = vsel %vm135, %v112, 0
  %v395 = vsel %vm135, %v113, 0
  %v398 = vsel %vm135, %v114, 0
  %v401 = vsel %vm135, %v115, 0
  %v404 = vsel %vm135, %v116, 0
  %v407 = vsel %vm135, %v117, 0
  %v410 = vsel %vm135, %v118, 0
  %v413 = vsel %vm135, %v119, 0
  %v416 = vsel %vm135, %v120, 0
  %v419 = vsel %vm135, %v121, 0
  %v422 = vsel %vm135, %v122, 0
  %v425 = vsel %vm135, %v123, 0
  %v428 = vsel %vm135, %v124, 0
  %v431 = vsel %vm135, %v125, 0
  %v434 = vsel %vm135, %v126, 0
  %v437 = vsel %vm135, %v127, 0
  %v440 = vsel %vm135, %v128, 0
  %v443 = vsel %vm135, %v129, 0
  %v446 = vsel %vm135, %v130, 0
  %v449 = vsel %vm135, %v131, 0
  %v452 = vsel %vm135, %v132, 0
  %v455 = vsel %vm135, %v133, 0
  %v458 = vsel %vm135, %v134, 0
  %vm460 = vcmask 1040384
  %v462 = vsel %vm460, %v26, 0
  %464 = vmatprep.subr.mxu0 0.0
  %465 = vmatpush1.msra.mxu0 %v23
  %466 = vmatprep.subr.mxu0 0.0
  %467 = vmatpush1.msra.mxu0 %v24
  %468 = vmatprep.subr.mxu0 0.0
  %469 = vmatpush1.msra.mxu0 %v25
  %470 = vmatprep.subr.mxu0 0.0
  %471 = vmatpush1.msra.mxu0 %v462
  %472 = vmatprep.subr.mxu0 0.0
  %473 = vmatpush1.msra.mxu0 0.0
  %474 = vmatprep.subr.mxu0 0.0
  %475 = vmatpush1.msra.mxu0 0.0
  %476 = vmatprep.subr.mxu0 0.0
  %477 = vmatpush1.msra.mxu0 0.0
  %478 = vmatprep.subr.mxu0 0.0
  %479 = vmatpush1.msra.mxu0 0.0
  %480 = vmatprep.subr.mxu0 0.0
  %481 = vmatpush1.msra.mxu0 0.0
  %482 = vmatprep.subr.mxu0 0.0
  %483 = vmatpush1.msra.mxu0 0.0
  %484 = vmatprep.subr.mxu0 0.0
  %485 = vmatpush1.msra.mxu0 0.0
  %486 = vmatprep.subr.mxu0 0.0
  %487 = vmatpush1.msra.mxu0 0.0
  %488 = vmatprep.subr.mxu0 0.0
  %489 = vmatpush1.msra.mxu0 0.0
  %490 = vmatprep.subr.mxu0 0.0
  %491 = vmatpush1.msra.mxu0 0.0
  %492 = vmatprep.subr.mxu0 0.0
  %493 = vmatpush1.msra.mxu0 0.0
  %494 = vmatprep.subr.mxu0 0.0
  %495 = vmatpush1.msra.mxu0 0.0
  %496 = vmatprep.subr.mxu0 0.0
  %497 = vmatpush1.msra.mxu0 0.0
  %498 = vmatprep.subr.mxu0 0.0
  %499 = vmatpush1.msra.mxu0 0.0
  %500 = vmatprep.subr.mxu0 0.0
  %501 = vmatpush1.msra.mxu0 0.0
  %502 = vmatprep.subr.mxu0 0.0
  %503 = vmatpush1.msra.mxu0 0.0
  %504 = vmatprep.subr.mxu0 0.0
  %505 = vmatpush1.msra.mxu0 0.0
  %506 = vmatprep.subr.mxu0 0.0
  %507 = vmatpush1.msra.mxu0 0.0
  %508 = vmatprep.subr.mxu0 0.0
  %509 = vmatpush1.msra.mxu0 0.0
  %510 = vmatprep.subr.mxu0 0.0
  %511 = vmatpush1.msra.mxu0 0.0
  %512 = vmatprep.subr.mxu0 0.0
  %513 = vmatpush1.msra.mxu0 0.0
  %514 = vmatprep.subr.mxu0 0.0
  %515 = vmatpush1.msra.mxu0 0.0
  %516 = vmatprep.subr.mxu0 0.0
  %517 = vmatpush1.msra.mxu0 0.0
  %518 = vmatprep.subr.mxu0 0.0
  %519 = vmatpush1.msra.mxu0 0.0
  %520 = vmatprep.subr.mxu0 0.0
  %521 = vmatpush1.msra.mxu0 0.0
  %522 = vmatprep.subr.mxu0 0.0
  %523 = vmatpush1.msra.mxu0 0.0
  %524 = vmatprep.subr.mxu0 0.0
  %525 = vmatpush1.msra.mxu0 0.0
  %526 = vmatprep.subr.mxu0 0.0
  %527 = vmatpush1.msra.mxu0 0.0
  %528 = vmatprep.mubr.f32.mxu0 0.0
  %529 = vmatmul.mubr.f32.gmra.mrb[0].mxu0 %v137
  %v530 = vpop.f32.mrb[0].mxu0
  %v531 = vadd.f32 0.0, %v530
  %v532 = vpop.f32.mrb[0].mxu0
  %533 = vmatprep.mubr.f32.mxu0 0.0
  %534 = vmatmul.mubr.f32.gmra.mrb[0].mxu0 %v140
  %v535 = vpop.f32.mrb[0].mxu0
  %v536 = vadd.f32 0.0, %v535
  %v537 = vpop.f32.mrb[0].mxu0
  %538 = vmatprep.mubr.f32.mxu0 0.0
  %539 = vmatmul.mubr.f32.gmra.mrb[0].mxu0 %v143
  %v540 = vpop.f32.mrb[0].mxu0
  %v541 = vadd.f32 0.0, %v540
  %v542 = vpop.f32.mrb[0].mxu0
  %543 = vmatprep.mubr.f32.mxu0 0.0
  %544 = vmatmul.mubr.f32.gmra.mrb[0].mxu0 %v146
  %v545 = vpop.f32.mrb[0].mxu0
  %v546 = vadd.f32 0.0, %v545
  %v547 = vpop.f32.mrb[0].mxu0
  %548 = vmatprep.mubr.f32.mxu0 0.0
  %549 = vmatmul.mubr.f32.gmra.mrb[0].mxu0 %v149
  %v550 = vpop.f32.mrb[0].mxu0
  %v551 = vadd.f32 0.0, %v550
  %v552 = vpop.f32.mrb[0].mxu0
  %553 = vmatprep.mubr.f32.mxu0 0.0
  %554 = vmatmul.mubr.f32.gmra.mrb[0].mxu0 %v152
  %v555 = vpop.f32.mrb[0].mxu0
  %v556 = vadd.f32 0.0, %v555
  %v557 = vpop.f32.mrb[0].mxu0
  %558 = vmatprep.mubr.f32.mxu0 0.0
  %559 = vmatmul.mubr.f32.gmra.mrb[0].mxu0 %v155
  %v560 = vpop.f32.mrb[0].mxu0
  %v561 = vadd.f32 0.0, %v560
  %v562 = vpop.f32.mrb[0].mxu0
  %563 = vmatprep.mubr.f32.mxu0 0.0
  %564 = vmatmul.mubr.f32.gmra.mrb[0].mxu0 %v158
  %v565 = vpop.f32.mrb[0].mxu0
  %v566 = vadd.f32 0.0, %v565
  %v567 = vpop.f32.mrb[0].mxu0
  %568 = vmatprep.mubr.f32.mxu0 0.0
  %569 = vmatmul.mubr.f32.gmra.mrb[0].mxu0 %v161
  %v570 = vpop.f32.mrb[0].mxu0
  %v571 = vadd.f32 0.0, %v570
  %v572 = vpop.f32.mrb[0].mxu0
  %573 = vmatprep.mubr.f32.mxu0 0.0
  %574 = vmatmul.mubr.f32.gmra.mrb[0].mxu0 %v164
  %v575 = vpop.f32.mrb[0].mxu0
  %v576 = vadd.f32 0.0, %v575
  %v577 = vpop.f32.mrb[0].mxu0
  %578 = vmatprep.mubr.f32.mxu0 0.0
  %579 = vmatmul.mubr.f32.gmra.mrb[0].mxu0 %v167
  %v580 = vpop.f32.mrb[0].mxu0
  %v581 = vadd.f32 0.0, %v580
  %v582 = vpop.f32.mrb[0].mxu0
  %583 = vmatprep.mubr.f32.mxu0 0.0
  %584 = vmatmul.mubr.f32.gmra.mrb[0].mxu0 %v170
  %v585 = vpop.f32.mrb[0].mxu0
  %v586 = vadd.f32 0.0, %v585
  %v587 = vpop.f32.mrb[0].mxu0
  %588 = vmatprep.mubr.f32.mxu0 0.0
  %589 = vmatmul.mubr.f32.gmra.mrb[0].mxu0 %v173
  %v590 = vpop.f32.mrb[0].mxu0
  %v591 = vadd.f32 0.0, %v590
  %v592 = vpop.f32.mrb[0].mxu0
  %593 = vmatprep.mubr.f32.mxu0 0.0
  %594 = vmatmul.mubr.f32.gmra.mrb[0].mxu0 %v176
  %v595 = vpop.f32.mrb[0].mxu0
  %v596 = vadd.f32 0.0, %v595
  %v597 = vpop.f32.mrb[0].mxu0
  %598 = vmatprep.mubr.f32.mxu0 0.0
  %599 = vmatmul.mubr.f32.gmra.mrb[0].mxu0 %v179
  %v600 = vpop.f32.mrb[0].mxu0
  %v601 = vadd.f32 0.0, %v600
  %v602 = vpop.f32.mrb[0].mxu0
  %603 = vmatprep.mubr.f32.mxu0 0.0
  %604 = vmatmul.mubr.f32.gmra.mrb[0].mxu0 %v182
  %v605 = vpop.f32.mrb[0].mxu0
  %v606 = vadd.f32 0.0, %v605
  %v607 = vpop.f32.mrb[0].mxu0
  %608 = vmatprep.mubr.f32.mxu0 0.0
  %609 = vmatmul.mubr.f32.gmra.mrb[0].mxu0 %v185
  %v610 = vpop.f32.mrb[0].mxu0
  %v611 = vadd.f32 0.0, %v610
  %v612 = vpop.f32.mrb[0].mxu0
  %613 = vmatprep.mubr.f32.mxu0 0.0
  %614 = vmatmul.mubr.f32.gmra.mrb[0].mxu0 %v188
  %v615 = vpop.f32.mrb[0].mxu0
  %v616 = vadd.f32 0.0, %v615
  %v617 = vpop.f32.mrb[0].mxu0
  %618 = vmatprep.mubr.f32.mxu0 0.0
  %619 = vmatmul.mubr.f32.gmra.mrb[0].mxu0 %v191
  %v620 = vpop.f32.mrb[0].mxu0
  %v621 = vadd.f32 0.0, %v620
  %v622 = vpop.f32.mrb[0].mxu0
  %623 = vmatprep.mubr.f32.mxu0 0.0
  %624 = vmatmul.mubr.f32.gmra.mrb[0].mxu0 %v194
  %v625 = vpop.f32.mrb[0].mxu0
  %v626 = vadd.f32 0.0, %v625
  %v627 = vpop.f32.mrb[0].mxu0
  %628 = vmatprep.mubr.f32.mxu0 0.0
  %629 = vmatmul.mubr.f32.gmra.mrb[0].mxu0 %v197
  %v630 = vpop.f32.mrb[0].mxu0
  %v631 = vadd.f32 0.0, %v630
  %v632 = vpop.f32.mrb[0].mxu0
  %633 = vmatprep.mubr.f32.mxu0 0.0
  %634 = vmatmul.mubr.f32.gmra.mrb[0].mxu0 %v200
  %v635 = vpop.f32.mrb[0].mxu0
  %v636 = vadd.f32 0.0, %v635
  %v637 = vpop.f32.mrb[0].mxu0
  %638 = vmatprep.mubr.f32.mxu0 0.0
  %639 = vmatmul.mubr.f32.gmra.mrb[0].mxu0 %v203
  %v640 = vpop.f32.mrb[0].mxu0
  %v641 = vadd.f32 0.0, %v640
  %v642 = vpop.f32.mrb[0].mxu0
  %643 = vmatprep.mubr.f32.mxu0 0.0
  %644 = vmatmul.mubr.f32.gmra.mrb[0].mxu0 %v206
  %v645 = vpop.f32.mrb[0].mxu0
  %v646 = vadd.f32 0.0, %v645
  %v647 = vpop.f32.mrb[0].mxu0
  %648 = vmatprep.mubr.f32.mxu0 0.0
  %649 = vmatmul.mubr.f32.gmra.mrb[0].mxu0 %v209
  %v650 = vpop.f32.mrb[0].mxu0
  %v651 = vadd.f32 0.0, %v650
  %v652 = vpop.f32.mrb[0].mxu0
  %653 = vmatprep.mubr.f32.mxu0 0.0
  %654 = vmatmul.mubr.f32.gmra.mrb[0].mxu0 %v212
  %v655 = vpop.f32.mrb[0].mxu0
  %v656 = vadd.f32 0.0, %v655
  %v657 = vpop.f32.mrb[0].mxu0
  %658 = vmatprep.mubr.f32.mxu0 0.0
  %659 = vmatmul.mubr.f32.gmra.mrb[0].mxu0 %v215
  %v660 = vpop.f32.mrb[0].mxu0
  %v661 = vadd.f32 0.0, %v660
  %v662 = vpop.f32.mrb[0].mxu0
  %663 = vmatprep.mubr.f32.mxu0 0.0
  %664 = vmatmul.mubr.f32.gmra.mrb[0].mxu0 %v218
  %v665 = vpop.f32.mrb[0].mxu0
  %v666 = vadd.f32 0.0, %v665
  %v667 = vpop.f32.mrb[0].mxu0
  %668 = vmatprep.mubr.f32.mxu0 0.0
  %669 = vmatmul.mubr.f32.gmra.mrb[0].mxu0 %v221
  %v670 = vpop.f32.mrb[0].mxu0
  %v671 = vadd.f32 0.0, %v670
  %v672 = vpop.f32.mrb[0].mxu0
  %673 = vmatprep.mubr.f32.mxu0 0.0
  %674 = vmatmul.mubr.f32.gmra.mrb[0].mxu0 %v224
  %v675 = vpop.f32.mrb[0].mxu0
  %v676 = vadd.f32 0.0, %v675
  %v677 = vpop.f32.mrb[0].mxu0
  %678 = vmatprep.mubr.f32.mxu0 0.0
  %679 = vmatmul.mubr.f32.gmra.mrb[0].mxu0 %v227
  %v680 = vpop.f32.mrb[0].mxu0
  %v681 = vadd.f32 0.0, %v680
  %v682 = vpop.f32.mrb[0].mxu0
  %683 = vmatprep.mubr.f32.mxu0 0.0
  %684 = vmatmul.mubr.f32.gmra.mrb[0].mxu0 %v230
  %v685 = vpop.f32.mrb[0].mxu0
  %v686 = vadd.f32 0.0, %v685
  %v687 = vpop.f32.mrb[0].mxu0
  %688 = vmatprep.mubr.f32.mxu0 0.0
  %689 = vmatmul.mubr.f32.gmra.mrb[0].mxu0 %v233
  %v690 = vpop.f32.mrb[0].mxu0
  %v691 = vadd.f32 0.0, %v690
  %v692 = vpop.f32.mrb[0].mxu0
  %693 = vmatprep.mubr.f32.mxu0 0.0
  %694 = vmatmul.mubr.f32.gmra.mrb[0].mxu0 %v236
  %v695 = vpop.f32.mrb[0].mxu0
  %v696 = vadd.f32 0.0, %v695
  %v697 = vpop.f32.mrb[0].mxu0
  %698 = vmatprep.mubr.f32.mxu0 0.0
  %699 = vmatmul.mubr.f32.gmra.mrb[0].mxu0 %v239
  %v700 = vpop.f32.mrb[0].mxu0
  %v701 = vadd.f32 0.0, %v700
  %v702 = vpop.f32.mrb[0].mxu0
  %703 = vmatprep.mubr.f32.mxu0 0.0
  %704 = vmatmul.mubr.f32.gmra.mrb[0].mxu0 %v242
  %v705 = vpop.f32.mrb[0].mxu0
  %v706 = vadd.f32 0.0, %v705
  %v707 = vpop.f32.mrb[0].mxu0
  %708 = vmatprep.mubr.f32.mxu0 0.0
  %709 = vmatmul.mubr.f32.gmra.mrb[0].mxu0 %v245
  %v710 = vpop.f32.mrb[0].mxu0
  %v711 = vadd.f32 0.0, %v710
  %v712 = vpop.f32.mrb[0].mxu0
  %713 = vmatprep.mubr.f32.mxu0 0.0
  %714 = vmatmul.mubr.f32.gmra.mrb[0].mxu0 %v248
  %v715 = vpop.f32.mrb[0].mxu0
  %v716 = vadd.f32 0.0, %v715
  %v717 = vpop.f32.mrb[0].mxu0
  %718 = vmatprep.mubr.f32.mxu0 0.0
  %719 = vmatmul.mubr.f32.gmra.mrb[0].mxu0 %v251
  %v720 = vpop.f32.mrb[0].mxu0
  %v721 = vadd.f32 0.0, %v720
  %v722 = vpop.f32.mrb[0].mxu0
  %723 = vmatprep.mubr.f32.mxu0 0.0
  %724 = vmatmul.mubr.f32.gmra.mrb[0].mxu0 %v254
  %v725 = vpop.f32.mrb[0].mxu0
  %v726 = vadd.f32 0.0, %v725
  %v727 = vpop.f32.mrb[0].mxu0
  %728 = vmatprep.mubr.f32.mxu0 0.0
  %729 = vmatmul.mubr.f32.gmra.mrb[0].mxu0 %v257
  %v730 = vpop.f32.mrb[0].mxu0
  %v731 = vadd.f32 0.0, %v730
  %v732 = vpop.f32.mrb[0].mxu0
  %733 = vmatprep.mubr.f32.mxu0 0.0
  %734 = vmatmul.mubr.f32.gmra.mrb[0].mxu0 %v260
  %v735 = vpop.f32.mrb[0].mxu0
  %v736 = vadd.f32 0.0, %v735
  %v737 = vpop.f32.mrb[0].mxu0
  %738 = vmatprep.mubr.f32.mxu0 0.0
  %739 = vmatmul.mubr.f32.gmra.mrb[0].mxu0 %v263
  %v740 = vpop.f32.mrb[0].mxu0
  %v741 = vadd.f32 0.0, %v740
  %v742 = vpop.f32.mrb[0].mxu0
  %743 = vmatprep.mubr.f32.mxu0 0.0
  %744 = vmatmul.mubr.f32.gmra.mrb[0].mxu0 %v266
  %v745 = vpop.f32.mrb[0].mxu0
  %v746 = vadd.f32 0.0, %v745
  %v747 = vpop.f32.mrb[0].mxu0
  %748 = vmatprep.mubr.f32.mxu0 0.0
  %749 = vmatmul.mubr.f32.gmra.mrb[0].mxu0 %v269
  %v750 = vpop.f32.mrb[0].mxu0
  %v751 = vadd.f32 0.0, %v750
  %v752 = vpop.f32.mrb[0].mxu0
  %753 = vmatprep.mubr.f32.mxu0 0.0
  %754 = vmatmul.mubr.f32.gmra.mrb[0].mxu0 %v272
  %v755 = vpop.f32.mrb[0].mxu0
  %v756 = vadd.f32 0.0, %v755
  %v757 = vpop.f32.mrb[0].mxu0
  %758 = vmatprep.mubr.f32.mxu0 0.0
  %759 = vmatmul.mubr.f32.gmra.mrb[0].mxu0 %v275
  %v760 = vpop.f32.mrb[0].mxu0
  %v761 = vadd.f32 0.0, %v760
  %v762 = vpop.f32.mrb[0].mxu0
  %763 = vmatprep.mubr.f32.mxu0 0.0
  %764 = vmatmul.mubr.f32.gmra.mrb[0].mxu0 %v278
  %v765 = vpop.f32.mrb[0].mxu0
  %v766 = vadd.f32 0.0, %v765
  %v767 = vpop.f32.mrb[0].mxu0
  %768 = vmatprep.mubr.f32.mxu0 0.0
  %769 = vmatmul.mubr.f32.gmra.mrb[0].mxu0 %v281
  %v770 = vpop.f32.mrb[0].mxu0
  %v771 = vadd.f32 0.0, %v770
  %v772 = vpop.f32.mrb[0].mxu0
  %773 = vmatprep.mubr.f32.mxu0 0.0
  %774 = vmatmul.mubr.f32.gmra.mrb[0].mxu0 %v284
  %v775 = vpop.f32.mrb[0].mxu0
  %v776 = vadd.f32 0.0, %v775
  %v777 = vpop.f32.mrb[0].mxu0
  %778 = vmatprep.mubr.f32.mxu0 0.0
  %779 = vmatmul.mubr.f32.gmra.mrb[0].mxu0 %v287
  %v780 = vpop.f32.mrb[0].mxu0
  %v781 = vadd.f32 0.0, %v780
  %v782 = vpop.f32.mrb[0].mxu0
  %783 = vmatprep.mubr.f32.mxu0 0.0
  %784 = vmatmul.mubr.f32.gmra.mrb[0].mxu0 %v290
  %v785 = vpop.f32.mrb[0].mxu0
  %v786 = vadd.f32 0.0, %v785
  %v787 = vpop.f32.mrb[0].mxu0
  %788 = vmatprep.mubr.f32.mxu0 0.0
  %789 = vmatmul.mubr.f32.gmra.mrb[0].mxu0 %v293
  %v790 = vpop.f32.mrb[0].mxu0
  %v791 = vadd.f32 0.0, %v790
  %v792 = vpop.f32.mrb[0].mxu0
  %793 = vmatprep.mubr.f32.mxu0 0.0
  %794 = vmatmul.mubr.f32.gmra.mrb[0].mxu0 %v296
  %v795 = vpop.f32.mrb[0].mxu0
  %v796 = vadd.f32 0.0, %v795
  %v797 = vpop.f32.mrb[0].mxu0
  %798 = vmatprep.mubr.f32.mxu0 0.0
  %799 = vmatmul.mubr.f32.gmra.mrb[0].mxu0 %v299
  %v800 = vpop.f32.mrb[0].mxu0
  %v801 = vadd.f32 0.0, %v800
  %v802 = vpop.f32.mrb[0].mxu0
  %803 = vmatprep.mubr.f32.mxu0 0.0
  %804 = vmatmul.mubr.f32.gmra.mrb[0].mxu0 %v302
  %v805 = vpop.f32.mrb[0].mxu0
  %v806 = vadd.f32 0.0, %v805
  %v807 = vpop.f32.mrb[0].mxu0
  %808 = vmatprep.mubr.f32.mxu0 0.0
  %809 = vmatmul.mubr.f32.gmra.mrb[0].mxu0 %v305
  %v810 = vpop.f32.mrb[0].mxu0
  %v811 = vadd.f32 0.0, %v810
  %v812 = vpop.f32.mrb[0].mxu0
  %813 = vmatprep.mubr.f32.mxu0 0.0
  %814 = vmatmul.mubr.f32.gmra.mrb[0].mxu0 %v308
  %v815 = vpop.f32.mrb[0].mxu0
  %v816 = vadd.f32 0.0, %v815
  %v817 = vpop.f32.mrb[0].mxu0
  %818 = vmatprep.mubr.f32.mxu0 0.0
  %819 = vmatmul.mubr.f32.gmra.mrb[0].mxu0 %v311
  %v820 = vpop.f32.mrb[0].mxu0
  %v821 = vadd.f32 0.0, %v820
  %v822 = vpop.f32.mrb[0].mxu0
  %823 = vmatprep.mubr.f32.mxu0 0.0
  %824 = vmatmul.mubr.f32.gmra.mrb[0].mxu0 %v314
  %v825 = vpop.f32.mrb[0].mxu0
  %v826 = vadd.f32 0.0, %v825
  %v827 = vpop.f32.mrb[0].mxu0
  %828 = vmatprep.mubr.f32.mxu0 0.0
  %829 = vmatmul.mubr.f32.gmra.mrb[0].mxu0 %v317
  %v830 = vpop.f32.mrb[0].mxu0
  %v831 = vadd.f32 0.0, %v830
  %v832 = vpop.f32.mrb[0].mxu0
  %833 = vmatprep.mubr.f32.mxu0 0.0
  %834 = vmatmul.mubr.f32.gmra.mrb[0].mxu0 %v320
  %v835 = vpop.f32.mrb[0].mxu0
  %v836 = vadd.f32 0.0, %v835
  %v837 = vpop.f32.mrb[0].mxu0
  %838 = vmatprep.mubr.f32.mxu0 0.0
  %839 = vmatmul.mubr.f32.gmra.mrb[0].mxu0 %v323
  %v840 = vpop.f32.mrb[0].mxu0
  %v841 = vadd.f32 0.0, %v840
  %v842 = vpop.f32.mrb[0].mxu0
  %843 = vmatprep.mubr.f32.mxu0 0.0
  %844 = vmatmul.mubr.f32.gmra.mrb[0].mxu0 %v326
  %v845 = vpop.f32.mrb[0].mxu0
  %v846 = vadd.f32 0.0, %v845
  %v847 = vpop.f32.mrb[0].mxu0
  %848 = vmatprep.mubr.f32.mxu0 0.0
  %849 = vmatmul.mubr.f32.gmra.mrb[0].mxu0 %v329
  %v850 = vpop.f32.mrb[0].mxu0
  %v851 = vadd.f32 0.0, %v850
  %v852 = vpop.f32.mrb[0].mxu0
  %853 = vmatprep.mubr.f32.mxu0 0.0
  %854 = vmatmul.mubr.f32.gmra.mrb[0].mxu0 %v332
  %v855 = vpop.f32.mrb[0].mxu0
  %v856 = vadd.f32 0.0, %v855
  %v857 = vpop.f32.mrb[0].mxu0
  %858 = vmatprep.mubr.f32.mxu0 0.0
  %859 = vmatmul.mubr.f32.gmra.mrb[0].mxu0 %v335
  %v860 = vpop.f32.mrb[0].mxu0
  %v861 = vadd.f32 0.0, %v860
  %v862 = vpop.f32.mrb[0].mxu0
  %863 = vmatprep.mubr.f32.mxu0 0.0
  %864 = vmatmul.mubr.f32.gmra.mrb[0].mxu0 %v338
  %v865 = vpop.f32.mrb[0].mxu0
  %v866 = vadd.f32 0.0, %v865
  %v867 = vpop.f32.mrb[0].mxu0
  %868 = vmatprep.mubr.f32.mxu0 0.0
  %869 = vmatmul.mubr.f32.gmra.mrb[0].mxu0 %v341
  %v870 = vpop.f32.mrb[0].mxu0
  %v871 = vadd.f32 0.0, %v870
  %v872 = vpop.f32.mrb[0].mxu0
  %873 = vmatprep.mubr.f32.mxu0 0.0
  %874 = vmatmul.mubr.f32.gmra.mrb[0].mxu0 %v344
  %v875 = vpop.f32.mrb[0].mxu0
  %v876 = vadd.f32 0.0, %v875
  %v877 = vpop.f32.mrb[0].mxu0
  %878 = vmatprep.mubr.f32.mxu0 0.0
  %879 = vmatmul.mubr.f32.gmra.mrb[0].mxu0 %v347
  %v880 = vpop.f32.mrb[0].mxu0
  %v881 = vadd.f32 0.0, %v880
  %v882 = vpop.f32.mrb[0].mxu0
  %883 = vmatprep.mubr.f32.mxu0 0.0
  %884 = vmatmul.mubr.f32.gmra.mrb[0].mxu0 %v350
  %v885 = vpop.f32.mrb[0].mxu0
  %v886 = vadd.f32 0.0, %v885
  %v887 = vpop.f32.mrb[0].mxu0
  %888 = vmatprep.mubr.f32.mxu0 0.0
  %889 = vmatmul.mubr.f32.gmra.mrb[0].mxu0 %v353
  %v890 = vpop.f32.mrb[0].mxu0
  %v891 = vadd.f32 0.0, %v890
  %v892 = vpop.f32.mrb[0].mxu0
  %893 = vmatprep.mubr.f32.mxu0 0.0
  %894 = vmatmul.mubr.f32.gmra.mrb[0].mxu0 %v356
  %v895 = vpop.f32.mrb[0].mxu0
  %v896 = vadd.f32 0.0, %v895
  %v897 = vpop.f32.mrb[0].mxu0
  %898 = vmatprep.mubr.f32.mxu0 0.0
  %899 = vmatmul.mubr.f32.gmra.mrb[0].mxu0 %v359
  %v900 = vpop.f32.mrb[0].mxu0
  %v901 = vadd.f32 0.0, %v900
  %v902 = vpop.f32.mrb[0].mxu0
  %903 = vmatprep.mubr.f32.mxu0 0.0
  %904 = vmatmul.mubr.f32.gmra.mrb[0].mxu0 %v362
  %v905 = vpop.f32.mrb[0].mxu0
  %v906 = vadd.f32 0.0, %v905
  %v907 = vpop.f32.mrb[0].mxu0
  %908 = vmatprep.mubr.f32.mxu0 0.0
  %909 = vmatmul.mubr.f32.gmra.mrb[0].mxu0 %v365
  %v910 = vpop.f32.mrb[0].mxu0
  %v911 = vadd.f32 0.0, %v910
  %v912 = vpop.f32.mrb[0].mxu0
  %913 = vmatprep.mubr.f32.mxu0 0.0
  %914 = vmatmul.mubr.f32.gmra.mrb[0].mxu0 %v368
  %v915 = vpop.f32.mrb[0].mxu0
  %v916 = vadd.f32 0.0, %v915
  %v917 = vpop.f32.mrb[0].mxu0
  %918 = vmatprep.mubr.f32.mxu0 0.0
  %919 = vmatmul.mubr.f32.gmra.mrb[0].mxu0 %v371
  %v920 = vpop.f32.mrb[0].mxu0
  %v921 = vadd.f32 0.0, %v920
  %v922 = vpop.f32.mrb[0].mxu0
  %923 = vmatprep.mubr.f32.mxu0 0.0
  %924 = vmatmul.mubr.f32.gmra.mrb[0].mxu0 %v374
  %v925 = vpop.f32.mrb[0].mxu0
  %v926 = vadd.f32 0.0, %v925
  %v927 = vpop.f32.mrb[0].mxu0
  %928 = vmatprep.mubr.f32.mxu0 0.0
  %929 = vmatmul.mubr.f32.gmra.mrb[0].mxu0 %v377
  %v930 = vpop.f32.mrb[0].mxu0
  %v931 = vadd.f32 0.0, %v930
  %v932 = vpop.f32.mrb[0].mxu0
  %933 = vmatprep.mubr.f32.mxu0 0.0
  %934 = vmatmul.mubr.f32.gmra.mrb[0].mxu0 %v380
  %v935 = vpop.f32.mrb[0].mxu0
  %v936 = vadd.f32 0.0, %v935
  %v937 = vpop.f32.mrb[0].mxu0
  %938 = vmatprep.mubr.f32.mxu0 0.0
  %939 = vmatmul.mubr.f32.gmra.mrb[0].mxu0 %v383
  %v940 = vpop.f32.mrb[0].mxu0
  %v941 = vadd.f32 0.0, %v940
  %v942 = vpop.f32.mrb[0].mxu0
  %943 = vmatprep.mubr.f32.mxu0 0.0
  %944 = vmatmul.mubr.f32.gmra.mrb[0].mxu0 %v386
  %v945 = vpop.f32.mrb[0].mxu0
  %v946 = vadd.f32 0.0, %v945
  %v947 = vpop.f32.mrb[0].mxu0
  %948 = vmatprep.mubr.f32.mxu0 0.0
  %949 = vmatmul.mubr.f32.gmra.mrb[0].mxu0 %v389
  %v950 = vpop.f32.mrb[0].mxu0
  %v951 = vadd.f32 0.0, %v950
  %v952 = vpop.f32.mrb[0].mxu0
  %953 = vmatprep.mubr.f32.mxu0 0.0
  %954 = vmatmul.mubr.f32.gmra.mrb[0].mxu0 %v392
  %v955 = vpop.f32.mrb[0].mxu0
  %v956 = vadd.f32 0.0, %v955
  %v957 = vpop.f32.mrb[0].mxu0
  %958 = vmatprep.mubr.f32.mxu0 0.0
  %959 = vmatmul.mubr.f32.gmra.mrb[0].mxu0 %v395
  %v960 = vpop.f32.mrb[0].mxu0
  %v961 = vadd.f32 0.0, %v960
  %v962 = vpop.f32.mrb[0].mxu0
  %963 = vmatprep.mubr.f32.mxu0 0.0
  %964 = vmatmul.mubr.f32.gmra.mrb[0].mxu0 %v398
  %v965 = vpop.f32.mrb[0].mxu0
  %v966 = vadd.f32 0.0, %v965
  %v967 = vpop.f32.mrb[0].mxu0
  %968 = vmatprep.mubr.f32.mxu0 0.0
  %969 = vmatmul.mubr.f32.gmra.mrb[0].mxu0 %v401
  %v970 = vpop.f32.mrb[0].mxu0
  %v971 = vadd.f32 0.0, %v970
  %v972 = vpop.f32.mrb[0].mxu0
  %973 = vmatprep.mubr.f32.mxu0 0.0
  %974 = vmatmul.mubr.f32.gmra.mrb[0].mxu0 %v404
  %v975 = vpop.f32.mrb[0].mxu0
  %v976 = vadd.f32 0.0, %v975
  %v977 = vpop.f32.mrb[0].mxu0
  %978 = vmatprep.mubr.f32.mxu0 0.0
  %979 = vmatmul.mubr.f32.gmra.mrb[0].mxu0 %v407
  %v980 = vpop.f32.mrb[0].mxu0
  %v981 = vadd.f32 0.0, %v980
  %v982 = vpop.f32.mrb[0].mxu0
  %983 = vmatprep.mubr.f32.mxu0 0.0
  %984 = vmatmul.mubr.f32.gmra.mrb[0].mxu0 %v410
  %v985 = vpop.f32.mrb[0].mxu0
  %v986 = vadd.f32 0.0, %v985
  %v987 = vpop.f32.mrb[0].mxu0
  %988 = vmatprep.mubr.f32.mxu0 0.0
  %989 = vmatmul.mubr.f32.gmra.mrb[0].mxu0 %v413
  %v990 = vpop.f32.mrb[0].mxu0
  %v991 = vadd.f32 0.0, %v990
  %v992 = vpop.f32.mrb[0].mxu0
  %993 = vmatprep.mubr.f32.mxu0 0.0
  %994 = vmatmul.mubr.f32.gmra.mrb[0].mxu0 %v416
  %v995 = vpop.f32.mrb[0].mxu0
  %v996 = vadd.f32 0.0, %v995
  %v997 = vpop.f32.mrb[0].mxu0
  %998 = vmatprep.mubr.f32.mxu0 0.0
  %999 = vmatmul.mubr.f32.gmra.mrb[0].mxu0 %v419
  %v1000 = vpop.f32.mrb[0].mxu0
  %v1001 = vadd.f32 0.0, %v1000
  %v1002 = vpop.f32.mrb[0].mxu0
  %1003 = vmatprep.mubr.f32.mxu0 0.0
  %1004 = vmatmul.mubr.f32.gmra.mrb[0].mxu0 %v422
  %v1005 = vpop.f32.mrb[0].mxu0
  %v1006 = vadd.f32 0.0, %v1005
  %v1007 = vpop.f32.mrb[0].mxu0
  %1008 = vmatprep.mubr.f32.mxu0 0.0
  %1009 = vmatmul.mubr.f32.gmra.mrb[0].mxu0 %v425
  %v1010 = vpop.f32.mrb[0].mxu0
  %v1011 = vadd.f32 0.0, %v1010
  %v1012 = vpop.f32.mrb[0].mxu0
  %1013 = vmatprep.mubr.f32.mxu0 0.0
  %1014 = vmatmul.mubr.f32.gmra.mrb[0].mxu0 %v428
  %v1015 = vpop.f32.mrb[0].mxu0
  %v1016 = vadd.f32 0.0, %v1015
  %v1017 = vpop.f32.mrb[0].mxu0
  %1018 = vmatprep.mubr.f32.mxu0 0.0
  %1019 = vmatmul.mubr.f32.gmra.mrb[0].mxu0 %v431
  %v1020 = vpop.f32.mrb[0].mxu0
  %v1021 = vadd.f32 0.0, %v1020
  %v1022 = vpop.f32.mrb[0].mxu0
  %1023 = vmatprep.mubr.f32.mxu0 0.0
  %1024 = vmatmul.mubr.f32.gmra.mrb[0].mxu0 %v434
  %v1025 = vpop.f32.mrb[0].mxu0
  %v1026 = vadd.f32 0.0, %v1025
  %v1027 = vpop.f32.mrb[0].mxu0
  %1028 = vmatprep.mubr.f32.mxu0 0.0
  %1029 = vmatmul.mubr.f32.gmra.mrb[0].mxu0 %v437
  %v1030 = vpop.f32.mrb[0].mxu0
  %v1031 = vadd.f32 0.0, %v1030
  %v1032 = vpop.f32.mrb[0].mxu0
  %1033 = vmatprep.mubr.f32.mxu0 0.0
  %1034 = vmatmul.mubr.f32.gmra.mrb[0].mxu0 %v440
  %v1035 = vpop.f32.mrb[0].mxu0
  %v1036 = vadd.f32 0.0, %v1035
  %v1037 = vpop.f32.mrb[0].mxu0
  %1038 = vmatprep.mubr.f32.mxu0 0.0
  %1039 = vmatmul.mubr.f32.gmra.mrb[0].mxu0 %v443
  %v1040 = vpop.f32.mrb[0].mxu0
  %v1041 = vadd.f32 0.0, %v1040
  %v1042 = vpop.f32.mrb[0].mxu0
  %1043 = vmatprep.mubr.f32.mxu0 0.0
  %1044 = vmatmul.mubr.f32.gmra.mrb[0].mxu0 %v446
  %v1045 = vpop.f32.mrb[0].mxu0
  %v1046 = vadd.f32 0.0, %v1045
  %v1047 = vpop.f32.mrb[0].mxu0
  %1048 = vmatprep.mubr.f32.mxu0 0.0
  %1049 = vmatmul.mubr.f32.gmra.mrb[0].mxu0 %v449
  %v1050 = vpop.f32.mrb[0].mxu0
  %v1051 = vadd.f32 0.0, %v1050
  %v1052 = vpop.f32.mrb[0].mxu0
  %1053 = vmatprep.mubr.f32.mxu0 0.0
  %1054 = vmatmul.mubr.f32.gmra.mrb[0].mxu0 %v452
  %v1055 = vpop.f32.mrb[0].mxu0
  %v1056 = vadd.f32 0.0, %v1055
  %v1057 = vpop.f32.mrb[0].mxu0
  %1058 = vmatprep.mubr.f32.mxu0 0.0
  %1059 = vmatmul.mubr.f32.gmra.mrb[0].mxu0 %v455
  %v1060 = vpop.f32.mrb[0].mxu0
  %v1061 = vadd.f32 0.0, %v1060
  %v1062 = vpop.f32.mrb[0].mxu0
  %1063 = vmatprep.mubr.f32.mxu0 0.0
  %1064 = vmatmul.mubr.f32.gmra.mrb[0].mxu0 %v458
  %v1065 = vpop.f32.mrb[0].mxu0
  %v1066 = vadd.f32 0.0, %v1065
  %v1067 = vpop.f32.mrb[0].mxu0
  %1068 = vdwg.mxu0
  %v1069 = vmul.f32 %v531, %v711
  %v1070 = vmul.f32 %v536, %v716
  %v1071 = vmul.f32 %v541, %v721
  %v1072 = vmul.f32 %v546, %v726
  %v1073 = vmul.f32 %v551, %v731
  %v1074 = vmul.f32 %v556, %v736
  %v1075 = vmul.f32 %v561, %v741
  %v1076 = vmul.f32 %v566, %v746
  %v1077 = vmul.f32 %v571, %v751
  %v1078 = vmul.f32 %v576, %v756
  %v1079 = vmul.f32 %v581, %v761
  %v1080 = vmul.f32 %v586, %v766
  %v1081 = vmul.f32 %v591, %v771
  %v1082 = vmul.f32 %v596, %v776
  %v1083 = vmul.f32 %v601, %v781
  %v1084 = vmul.f32 %v606, %v786
  %v1085 = vmul.f32 %v611, %v791
  %v1086 = vmul.f32 %v616, %v796
  %v1087 = vmul.f32 %v621, %v801
  %v1088 = vmul.f32 %v626, %v806
  %v1089 = vmul.f32 %v631, %v811
  %v1090 = vmul.f32 %v636, %v816
  %v1091 = vmul.f32 %v641, %v821
  %v1092 = vmul.f32 %v646, %v826
  %v1093 = vmul.f32 %v651, %v831
  %v1094 = vmul.f32 %v656, %v836
  %v1095 = vmul.f32 %v661, %v841
  %v1096 = vmul.f32 %v666, %v846
  %v1097 = vmul.f32 %v671, %v851
  %v1098 = vmul.f32 %v676, %v856
  %v1099 = vmul.f32 %v681, %v861
  %v1100 = vmul.f32 %v686, %v866
  %v1101 = vmul.f32 %v691, %v871
  %v1102 = vmul.f32 %v696, %v876
  %v1103 = vmul.f32 %v701, %v881
  %v1104 = vmul.f32 %v706, %v886
  %v1105 = vld [vmem:[%s2] sm:$0xff]
  %v1106 = vld [vmem:[%s2 + $0x8] sm:$0xff]
  %v1107 = vld [vmem:[%s2 + $0x10] sm:$0xff]
  %v1108 = vld [vmem:[%s2 + $0x18] sm:$0xff]
  %v1109 = vld [vmem:[%s2 + $0x20] sm:$0xff]
  %v1110 = vld [vmem:[%s2 + $0x28] sm:$0xff]
  %v1111 = vld [vmem:[%s2 + $0x30] sm:$0xff]
  %v1112 = vld [vmem:[%s2 + $0x38] sm:$0xff]
  %v1113 = vld [vmem:[%s2 + $0x40] sm:$0xff]
  %v1114 = vld [vmem:[%s2 + $0x48] sm:$0xff]
  %v1115 = vld [vmem:[%s2 + $0x50] sm:$0xff]
  %v1116 = vld [vmem:[%s2 + $0x58] sm:$0xff]
  %v1117 = vld [vmem:[%s2 + $0x60] sm:$0xff]
  %v1118 = vld [vmem:[%s2 + $0x68] sm:$0xff]
  %v1119 = vld [vmem:[%s2 + $0x70] sm:$0xff]
  %v1120 = vld [vmem:[%s2 + $0x78] sm:$0xff]
  %v1121 = vld [vmem:[%s2 + $0x80] sm:$0xff]
  %v1122 = vld [vmem:[%s2 + $0x88] sm:$0xff]
  %vm1123 = vcmask 261120
  %v1125 = vsel %vm1123, %v1107, 0
  %v1128 = vsel %vm1123, %v1110, 0
  %v1131 = vsel %vm1123, %v1113, 0
  %v1134 = vsel %vm1123, %v1116, 0
  %v1137 = vsel %vm1123, %v1119, 0
  %v1140 = vsel %vm1123, %v1122, 0
  %1142 = vmatprep.subr.mxu0 0.0
  %1143 = vmatpush1.msra.mxu0 %v1069
  %1144 = vmatprep.subr.mxu0 0.0
  %1145 = vmatpush1.msra.mxu0 %v1070
  %1146 = vmatprep.subr.mxu0 0.0
  %1147 = vmatpush1.msra.mxu0 %v1071
  %1148 = vmatprep.subr.mxu0 0.0
  %1149 = vmatpush1.msra.mxu0 %v1072
  %1150 = vmatprep.subr.mxu0 0.0
  %1151 = vmatpush1.msra.mxu0 %v1073
  %1152 = vmatprep.subr.mxu0 0.0
  %1153 = vmatpush1.msra.mxu0 %v1074
  %1154 = vmatprep.subr.mxu0 0.0
  %1155 = vmatpush1.msra.mxu0 %v1075
  %1156 = vmatprep.subr.mxu0 0.0
  %1157 = vmatpush1.msra.mxu0 %v1076
  %1158 = vmatprep.subr.mxu0 0.0
  %1159 = vmatpush1.msra.mxu0 %v1077
  %1160 = vmatprep.subr.mxu0 0.0
  %1161 = vmatpush1.msra.mxu0 %v1078
  %1162 = vmatprep.subr.mxu0 0.0
  %1163 = vmatpush1.msra.mxu0 %v1079
  %1164 = vmatprep.subr.mxu0 0.0
  %1165 = vmatpush1.msra.mxu0 %v1080
  %1166 = vmatprep.subr.mxu0 0.0
  %1167 = vmatpush1.msra.mxu0 %v1081
  %1168 = vmatprep.subr.mxu0 0.0
  %1169 = vmatpush1.msra.mxu0 %v1082
  %1170 = vmatprep.subr.mxu0 0.0
  %1171 = vmatpush1.msra.mxu0 %v1083
  %1172 = vmatprep.subr.mxu0 0.0
  %1173 = vmatpush1.msra.mxu0 %v1084
  %1174 = vmatprep.subr.mxu0 0.0
  %1175 = vmatpush1.msra.mxu0 %v1085
  %1176 = vmatprep.subr.mxu0 0.0
  %1177 = vmatpush1.msra.mxu0 %v1086
  %1178 = vmatprep.subr.mxu0 0.0
  %1179 = vmatpush1.msra.mxu0 %v1087
  %1180 = vmatprep.subr.mxu0 0.0
  %1181 = vmatpush1.msra.mxu0 %v1088
  %1182 = vmatprep.subr.mxu0 0.0
  %1183 = vmatpush1.msra.mxu0 %v1089
  %1184 = vmatprep.subr.mxu0 0.0
  %1185 = vmatpush1.msra.mxu0 %v1090
  %1186 = vmatprep.subr.mxu0 0.0
  %1187 = vmatpush1.msra.mxu0 %v1091
  %1188 = vmatprep.subr.mxu0 0.0
  %1189 = vmatpush1.msra.mxu0 %v1092
  %1190 = vmatprep.subr.mxu0 0.0
  %1191 = vmatpush1.msra.mxu0 %v1093
  %1192 = vmatprep.subr.mxu0 0.0
  %1193 = vmatpush1.msra.mxu0 %v1094
  %1194 = vmatprep.subr.mxu0 0.0
  %1195 = vmatpush1.msra.mxu0 %v1095
  %1196 = vmatprep.subr.mxu0 0.0
  %1197 = vmatpush1.msra.mxu0 %v1096
  %1198 = vmatprep.subr.mxu0 0.0
  %1199 = vmatpush1.msra.mxu0 %v1097
  %1200 = vmatprep.subr.mxu0 0.0
  %1201 = vmatpush1.msra.mxu0 %v1098
  %1202 = vmatprep.subr.mxu0 0.0
  %1203 = vmatpush1.msra.mxu0 %v1099
  %1204 = vmatprep.subr.mxu0 0.0
  %1205 = vmatpush1.msra.mxu0 %v1100
  %1206 = vmatprep.mubr.f32.mxu0 %v1106
  %1207 = vmatmul.mubr.f32.gmra.mrb[0].mxu0 %v1105
  %v1208 = vpop.f32.mrb[0].mxu0
  %v1209 = vadd.f32 0.0, %v1208
  %v1210 = vpop.f32.mrb[0].mxu0
  %1211 = vmatprep.mubr.f32.mxu0 %v1109
  %1212 = vmatmul.mubr.f32.gmra.mrb[0].mxu0 %v1108
  %v1213 = vpop.f32.mrb[0].mxu0
  %v1214 = vadd.f32 0.0, %v1213
  %v1215 = vpop.f32.mrb[0].mxu0
  %1216 = vmatprep.mubr.f32.mxu0 %v1112
  %1217 = vmatmul.mubr.f32.gmra.mrb[0].mxu0 %v1111
  %v1218 = vpop.f32.mrb[0].mxu0
  %v1219 = vadd.f32 0.0, %v1218
  %v1220 = vpop.f32.mrb[0].mxu0
  %1221 = vmatprep.mubr.f32.mxu0 %v1115
  %1222 = vmatmul.mubr.f32.gmra.mrb[0].mxu0 %v1114
  %v1223 = vpop.f32.mrb[0].mxu0
  %v1224 = vadd.f32 0.0, %v1223
  %v1225 = vpop.f32.mrb[0].mxu0
  %1226 = vmatprep.mubr.f32.mxu0 %v1118
  %1227 = vmatmul.mubr.f32.gmra.mrb[0].mxu0 %v1117
  %v1228 = vpop.f32.mrb[0].mxu0
  %v1229 = vadd.f32 0.0, %v1228
  %v1230 = vpop.f32.mrb[0].mxu0
  %1231 = vmatprep.mubr.f32.mxu0 %v1121
  %1232 = vmatmul.mubr.f32.gmra.mrb[0].mxu0 %v1120
  %v1233 = vpop.f32.mrb[0].mxu0
  %v1234 = vadd.f32 0.0, %v1233
  %v1235 = vpop.f32.mrb[0].mxu0
  %1236 = vdwg.mxu0
  %1237 = vmatprep.subr.mxu0 0.0
  %1238 = vmatpush1.msra.mxu0 %v1101
  %1239 = vmatprep.subr.mxu0 0.0
  %1240 = vmatpush1.msra.mxu0 %v1102
  %1241 = vmatprep.subr.mxu0 0.0
  %1242 = vmatpush1.msra.mxu0 %v1103
  %1243 = vmatprep.subr.mxu0 0.0
  %1244 = vmatpush1.msra.mxu0 %v1104
  %1245 = vmatprep.subr.mxu0 0.0
  %1246 = vmatpush1.msra.mxu0 0.0
  %1247 = vmatprep.subr.mxu0 0.0
  %1248 = vmatpush1.msra.mxu0 0.0
  %1249 = vmatprep.subr.mxu0 0.0
  %1250 = vmatpush1.msra.mxu0 0.0
  %1251 = vmatprep.subr.mxu0 0.0
  %1252 = vmatpush1.msra.mxu0 0.0
  %1253 = vmatprep.subr.mxu0 0.0
  %1254 = vmatpush1.msra.mxu0 0.0
  %1255 = vmatprep.subr.mxu0 0.0
  %1256 = vmatpush1.msra.mxu0 0.0
  %1257 = vmatprep.subr.mxu0 0.0
  %1258 = vmatpush1.msra.mxu0 0.0
  %1259 = vmatprep.subr.mxu0 0.0
  %1260 = vmatpush1.msra.mxu0 0.0
  %1261 = vmatprep.subr.mxu0 0.0
  %1262 = vmatpush1.msra.mxu0 0.0
  %1263 = vmatprep.subr.mxu0 0.0
  %1264 = vmatpush1.msra.mxu0 0.0
  %1265 = vmatprep.subr.mxu0 0.0
  %1266 = vmatpush1.msra.mxu0 0.0
  %1267 = vmatprep.subr.mxu0 0.0
  %1268 = vmatpush1.msra.mxu0 0.0
  %1269 = vmatprep.subr.mxu0 0.0
  %1270 = vmatpush1.msra.mxu0 0.0
  %1271 = vmatprep.subr.mxu0 0.0
  %1272 = vmatpush1.msra.mxu0 0.0
  %1273 = vmatprep.subr.mxu0 0.0
  %1274 = vmatpush1.msra.mxu0 0.0
  %1275 = vmatprep.subr.mxu0 0.0
  %1276 = vmatpush1.msra.mxu0 0.0
  %1277 = vmatprep.subr.mxu0 0.0
  %1278 = vmatpush1.msra.mxu0 0.0
  %1279 = vmatprep.subr.mxu0 0.0
  %1280 = vmatpush1.msra.mxu0 0.0
  %1281 = vmatprep.subr.mxu0 0.0
  %1282 = vmatpush1.msra.mxu0 0.0
  %1283 = vmatprep.subr.mxu0 0.0
  %1284 = vmatpush1.msra.mxu0 0.0
  %1285 = vmatprep.subr.mxu0 0.0
  %1286 = vmatpush1.msra.mxu0 0.0
  %1287 = vmatprep.subr.mxu0 0.0
  %1288 = vmatpush1.msra.mxu0 0.0
  %1289 = vmatprep.subr.mxu0 0.0
  %1290 = vmatpush1.msra.mxu0 0.0
  %1291 = vmatprep.subr.mxu0 0.0
  %1292 = vmatpush1.msra.mxu0 0.0
  %1293 = vmatprep.subr.mxu0 0.0
  %1294 = vmatpush1.msra.mxu0 0.0
  %1295 = vmatprep.subr.mxu0 0.0
  %1296 = vmatpush1.msra.mxu0 0.0
  %1297 = vmatprep.subr.mxu0 0.0
  %1298 = vmatpush1.msra.mxu0 0.0
  %1299 = vmatprep.subr.mxu0 0.0
  %1300 = vmatpush1.msra.mxu0 0.0
  %1301 = vmatprep.mubr.f32.mxu0 0.0
  %1302 = vmatmul.mubr.f32.gmra.mrb[0].mxu0 %v1125
  %v1303 = vpop.f32.mrb[0].mxu0
  %v1304 = vadd.f32 %v1209, %v1303
  %v1305 = vpop.f32.mrb[0].mxu0
  %1306 = vmatprep.mubr.f32.mxu0 0.0
  %1307 = vmatmul.mubr.f32.gmra.mrb[0].mxu0 %v1128
  %v1308 = vpop.f32.mrb[0].mxu0
  %v1309 = vadd.f32 %v1214, %v1308
  %v1310 = vpop.f32.mrb[0].mxu0
  %1311 = vmatprep.mubr.f32.mxu0 0.0
  %1312 = vmatmul.mubr.f32.gmra.mrb[0].mxu0 %v1131
  %v1313 = vpop.f32.mrb[0].mxu0
  %v1314 = vadd.f32 %v1219, %v1313
  %v1315 = vpop.f32.mrb[0].mxu0
  %1316 = vmatprep.mubr.f32.mxu0 0.0
  %1317 = vmatmul.mubr.f32.gmra.mrb[0].mxu0 %v1134
  %v1318 = vpop.f32.mrb[0].mxu0
  %v1319 = vadd.f32 %v1224, %v1318
  %v1320 = vpop.f32.mrb[0].mxu0
  %1321 = vmatprep.mubr.f32.mxu0 0.0
  %1322 = vmatmul.mubr.f32.gmra.mrb[0].mxu0 %v1137
  %v1323 = vpop.f32.mrb[0].mxu0
  %v1324 = vadd.f32 %v1229, %v1323
  %v1325 = vpop.f32.mrb[0].mxu0
  %1326 = vmatprep.mubr.f32.mxu0 0.0
  %1327 = vmatmul.mubr.f32.gmra.mrb[0].mxu0 %v1140
  %v1328 = vpop.f32.mrb[0].mxu0
  %v1329 = vadd.f32 %v1234, %v1328
  %v1330 = vpop.f32.mrb[0].mxu0
  %1331 = vdwg.mxu0
  %v1332 = vmax.f32 %v1304, %v1314
  %v1333 = vmax.f32 %v1309, %v1319
  %v1334 = vmax.f32 %v1332, %v1324
  %v1335 = vmax.f32 %v1333, %v1329
  %v1336 = vsub.f32 %v1304, %v1334
  %v1337 = vsub.f32 %v1309, %v1335
  %v1338 = vmul.f32 %v1336, 1.442695
  %v1339 = vpow.pop %v1338
  %v1340 = vmul.f32 %v1337, 1.442695
  %v1341 = vpow.pop %v1340
  %v1342 = vsub.f32 %v1314, %v1334
  %v1343 = vsub.f32 %v1319, %v1335
  %v1344 = vmul.f32 %v1342, 1.442695
  %v1345 = vpow.pop %v1344
  %v1346 = vmul.f32 %v1343, 1.442695
  %v1347 = vpow.pop %v1346
  %v1348 = vsub.f32 %v1324, %v1334
  %v1349 = vsub.f32 %v1329, %v1335
  %v1350 = vmul.f32 %v1348, 1.442695
  %v1351 = vpow.pop %v1350
  %v1352 = vmul.f32 %v1349, 1.442695
  %v1353 = vpow.pop %v1352
  %v1354 = vadd.f32 %v1339, %v1345
  %v1355 = vadd.f32 %v1341, %v1347
  %v1356 = vadd.f32 %v1354, %v1351
  %v1357 = vadd.f32 %v1355, %v1353
  %v1358 = vrcp.pop %v1356
  %v1359 = vrcp.pop %v1357
  %v1360 = vld [vmem:[%s3] sm:$0xff]
  %v1361 = vld [vmem:[%s3 + $0x8] sm:$0xff]
  %v1362 = vld [vmem:[%s3 + $0x10] sm:$0xff]
  %v1363 = vld [vmem:[%s3 + $0x18] sm:$0xff]
  %v1364 = vld [vmem:[%s3 + $0x20] sm:$0xff]
  %v1365 = vld [vmem:[%s3 + $0x28] sm:$0xff]
  %v1366 = vld [vmem:[%s3 + $0x30] sm:$0xff]
  %v1367 = vld [vmem:[%s3 + $0x38] sm:$0xff]
  %v1368 = vld [vmem:[%s3 + $0x40] sm:$0xff]
  %v1369 = vld [vmem:[%s3 + $0x48] sm:$0xff]
  %v1370 = vld [vmem:[%s3 + $0x50] sm:$0xff]
  %v1371 = vld [vmem:[%s3 + $0x58] sm:$0xff]
  %v1372 = vmul.f32 %v1339, %v1358
  %v1373 = vmul.f32 %v1341, %v1359
  %vm1374 = vcmask 130048
  %v1376 = vsel %vm1374, %v1360, 0
  %v1379 = vsel %vm1374, %v1361, 0
  %v1382 = vsel %vm1374, %v1362, 0
  %v1385 = vsel %vm1374, %v1363, 0
  %v1388 = vsel %vm1374, %v1364, 0
  %v1391 = vsel %vm1374, %v1365, 0
  %v1394 = vsel %vm1374, %v1366, 0
  %v1397 = vsel %vm1374, %v1367, 0
  %v1400 = vsel %vm1374, %v1368, 0
  %v1403 = vsel %vm1374, %v1369, 0
  %v1406 = vsel %vm1374, %v1370, 0
  %v1409 = vsel %vm1374, %v1371, 0
  %1411 = vmatprep.subr.mxu0 0.0
  %1412 = vmatpush1.msra.mxu0 %v1372
  %1413 = vmatprep.subr.mxu0 0.0
  %1414 = vmatpush1.msra.mxu0 %v1373
  %1415 = vmatprep.subr.mxu0 0.0
  %1416 = vmatpush1.msra.mxu0 0.0
  %1417 = vmatprep.subr.mxu0 0.0
  %1418 = vmatpush1.msra.mxu0 0.0
  %1419 = vmatprep.subr.mxu0 0.0
  %1420 = vmatpush1.msra.mxu0 0.0
  %1421 = vmatprep.subr.mxu0 0.0
  %1422 = vmatpush1.msra.mxu0 0.0
  %1423 = vmatprep.subr.mxu0 0.0
  %1424 = vmatpush1.msra.mxu0 0.0
  %1425 = vmatprep.subr.mxu0 0.0
  %1426 = vmatpush1.msra.mxu0 0.0
  %1427 = vmatprep.subr.mxu0 0.0
  %1428 = vmatpush1.msra.mxu0 0.0
  %1429 = vmatprep.subr.mxu0 0.0
  %1430 = vmatpush1.msra.mxu0 0.0
  %1431 = vmatprep.subr.mxu0 0.0
  %1432 = vmatpush1.msra.mxu0 0.0
  %1433 = vmatprep.subr.mxu0 0.0
  %1434 = vmatpush1.msra.mxu0 0.0
  %1435 = vmatprep.subr.mxu0 0.0
  %1436 = vmatpush1.msra.mxu0 0.0
  %1437 = vmatprep.subr.mxu0 0.0
  %1438 = vmatpush1.msra.mxu0 0.0
  %1439 = vmatprep.subr.mxu0 0.0
  %1440 = vmatpush1.msra.mxu0 0.0
  %1441 = vmatprep.subr.mxu0 0.0
  %1442 = vmatpush1.msra.mxu0 0.0
  %1443 = vmatprep.subr.mxu0 0.0
  %1444 = vmatpush1.msra.mxu0 0.0
  %1445 = vmatprep.subr.mxu0 0.0
  %1446 = vmatpush1.msra.mxu0 0.0
  %1447 = vmatprep.subr.mxu0 0.0
  %1448 = vmatpush1.msra.mxu0 0.0
  %1449 = vmatprep.subr.mxu0 0.0
  %1450 = vmatpush1.msra.mxu0 0.0
  %1451 = vmatprep.subr.mxu0 0.0
  %1452 = vmatpush1.msra.mxu0 0.0
  %1453 = vmatprep.subr.mxu0 0.0
  %1454 = vmatpush1.msra.mxu0 0.0
  %1455 = vmatprep.subr.mxu0 0.0
  %1456 = vmatpush1.msra.mxu0 0.0
  %1457 = vmatprep.subr.mxu0 0.0
  %1458 = vmatpush1.msra.mxu0 0.0
  %1459 = vmatprep.subr.mxu0 0.0
  %1460 = vmatpush1.msra.mxu0 0.0
  %1461 = vmatprep.subr.mxu0 0.0
  %1462 = vmatpush1.msra.mxu0 0.0
  %1463 = vmatprep.subr.mxu0 0.0
  %1464 = vmatpush1.msra.mxu0 0.0
  %1465 = vmatprep.subr.mxu0 0.0
  %1466 = vmatpush1.msra.mxu0 0.0
  %1467 = vmatprep.subr.mxu0 0.0
  %1468 = vmatpush1.msra.mxu0 0.0
  %1469 = vmatprep.subr.mxu0 0.0
  %1470 = vmatpush1.msra.mxu0 0.0
  %1471 = vmatprep.subr.mxu0 0.0
  %1472 = vmatpush1.msra.mxu0 0.0
  %1473 = vmatprep.subr.mxu0 0.0
  %1474 = vmatpush1.msra.mxu0 0.0
  %1475 = vmatprep.mubr.f32.mxu0 0.0
  %1476 = vmatmul.mubr.f32.gmra.mrb[0].mxu0 %v1376
  %v1477 = vpop.f32.mrb[0].mxu0
  %v1478 = vadd.f32 0.0, %v1477
  %v1479 = vpop.f32.mrb[0].mxu0
  %1480 = vmatprep.mubr.f32.mxu0 0.0
  %1481 = vmatmul.mubr.f32.gmra.mrb[0].mxu0 %v1379
  %v1482 = vpop.f32.mrb[0].mxu0
  %v1483 = vadd.f32 0.0, %v1482
  %v1484 = vpop.f32.mrb[0].mxu0
  %1485 = vmatprep.mubr.f32.mxu0 0.0
  %1486 = vmatmul.mubr.f32.gmra.mrb[0].mxu0 %v1382
  %v1487 = vpop.f32.mrb[0].mxu0
  %v1488 = vadd.f32 0.0, %v1487
  %v1489 = vpop.f32.mrb[0].mxu0
  %1490 = vmatprep.mubr.f32.mxu0 0.0
  %1491 = vmatmul.mubr.f32.gmra.mrb[0].mxu0 %v1385
  %v1492 = vpop.f32.mrb[0].mxu0
  %v1493 = vadd.f32 0.0, %v1492
  %v1494 = vpop.f32.mrb[0].mxu0
  %1495 = vmatprep.mubr.f32.mxu0 0.0
  %1496 = vmatmul.mubr.f32.gmra.mrb[0].mxu0 %v1388
  %v1497 = vpop.f32.mrb[0].mxu0
  %v1498 = vadd.f32 0.0, %v1497
  %v1499 = vpop.f32.mrb[0].mxu0
  %1500 = vmatprep.mubr.f32.mxu0 0.0
  %1501 = vmatmul.mubr.f32.gmra.mrb[0].mxu0 %v1391
  %v1502 = vpop.f32.mrb[0].mxu0
  %v1503 = vadd.f32 0.0, %v1502
  %v1504 = vpop.f32.mrb[0].mxu0
  %1505 = vmatprep.mubr.f32.mxu0 0.0
  %1506 = vmatmul.mubr.f32.gmra.mrb[0].mxu0 %v1394
  %v1507 = vpop.f32.mrb[0].mxu0
  %v1508 = vadd.f32 0.0, %v1507
  %v1509 = vpop.f32.mrb[0].mxu0
  %1510 = vmatprep.mubr.f32.mxu0 0.0
  %1511 = vmatmul.mubr.f32.gmra.mrb[0].mxu0 %v1397
  %v1512 = vpop.f32.mrb[0].mxu0
  %v1513 = vadd.f32 0.0, %v1512
  %v1514 = vpop.f32.mrb[0].mxu0
  %1515 = vmatprep.mubr.f32.mxu0 0.0
  %1516 = vmatmul.mubr.f32.gmra.mrb[0].mxu0 %v1400
  %v1517 = vpop.f32.mrb[0].mxu0
  %v1518 = vadd.f32 0.0, %v1517
  %v1519 = vpop.f32.mrb[0].mxu0
  %1520 = vmatprep.mubr.f32.mxu0 0.0
  %1521 = vmatmul.mubr.f32.gmra.mrb[0].mxu0 %v1403
  %v1522 = vpop.f32.mrb[0].mxu0
  %v1523 = vadd.f32 0.0, %v1522
  %v1524 = vpop.f32.mrb[0].mxu0
  %1525 = vmatprep.mubr.f32.mxu0 0.0
  %1526 = vmatmul.mubr.f32.gmra.mrb[0].mxu0 %v1406
  %v1527 = vpop.f32.mrb[0].mxu0
  %v1528 = vadd.f32 0.0, %v1527
  %v1529 = vpop.f32.mrb[0].mxu0
  %1530 = vmatprep.mubr.f32.mxu0 0.0
  %1531 = vmatmul.mubr.f32.gmra.mrb[0].mxu0 %v1409
  %v1532 = vpop.f32.mrb[0].mxu0
  %v1533 = vadd.f32 0.0, %v1532
  %v1534 = vpop.f32.mrb[0].mxu0
  %1535 = vdwg.mxu0
  %v1536 = vmul.f32 %v1478, %v891
  %v1537 = vmul.f32 %v1483, %v896
  %v1538 = vmul.f32 %v1488, %v901
  %v1539 = vmul.f32 %v1493, %v906
  %v1540 = vmul.f32 %v1498, %v911
  %v1541 = vmul.f32 %v1503, %v916
  %v1542 = vmul.f32 %v1508, %v921
  %v1543 = vmul.f32 %v1513, %v926
  %v1544 = vmul.f32 %v1518, %v931
  %v1545 = vmul.f32 %v1523, %v936
  %v1546 = vmul.f32 %v1528, %v941
  %v1547 = vmul.f32 %v1533, %v946
  %v1548 = vmul.f32 %v1345, %v1358
  %v1549 = vmul.f32 %v1347, %v1359
  %1550 = vmatprep.subr.mxu0 0.0
  %1551 = vmatpush1.msra.mxu0 %v1548
  %1552 = vmatprep.subr.mxu0 0.0
  %1553 = vmatpush1.msra.mxu0 %v1549
  %1554 = vmatprep.subr.mxu0 0.0
  %1555 = vmatpush1.msra.mxu0 0.0
  %1556 = vmatprep.subr.mxu0 0.0
  %1557 = vmatpush1.msra.mxu0 0.0
  %1558 = vmatprep.subr.mxu0 0.0
  %1559 = vmatpush1.msra.mxu0 0.0
  %1560 = vmatprep.subr.mxu0 0.0
  %1561 = vmatpush1.msra.mxu0 0.0
  %1562 = vmatprep.subr.mxu0 0.0
  %1563 = vmatpush1.msra.mxu0 0.0
  %1564 = vmatprep.subr.mxu0 0.0
  %1565 = vmatpush1.msra.mxu0 0.0
  %1566 = vmatprep.subr.mxu0 0.0
  %1567 = vmatpush1.msra.mxu0 0.0
  %1568 = vmatprep.subr.mxu0 0.0
  %1569 = vmatpush1.msra.mxu0 0.0
  %1570 = vmatprep.subr.mxu0 0.0
  %1571 = vmatpush1.msra.mxu0 0.0
  %1572 = vmatprep.subr.mxu0 0.0
  %1573 = vmatpush1.msra.mxu0 0.0
  %1574 = vmatprep.subr.mxu0 0.0
  %1575 = vmatpush1.msra.mxu0 0.0
  %1576 = vmatprep.subr.mxu0 0.0
  %1577 = vmatpush1.msra.mxu0 0.0
  %1578 = vmatprep.subr.mxu0 0.0
  %1579 = vmatpush1.msra.mxu0 0.0
  %1580 = vmatprep.subr.mxu0 0.0
  %1581 = vmatpush1.msra.mxu0 0.0
  %1582 = vmatprep.subr.mxu0 0.0
  %1583 = vmatpush1.msra.mxu0 0.0
  %1584 = vmatprep.subr.mxu0 0.0
  %1585 = vmatpush1.msra.mxu0 0.0
  %1586 = vmatprep.subr.mxu0 0.0
  %1587 = vmatpush1.msra.mxu0 0.0
  %1588 = vmatprep.subr.mxu0 0.0
  %1589 = vmatpush1.msra.mxu0 0.0
  %1590 = vmatprep.subr.mxu0 0.0
  %1591 = vmatpush1.msra.mxu0 0.0
  %1592 = vmatprep.subr.mxu0 0.0
  %1593 = vmatpush1.msra.mxu0 0.0
  %1594 = vmatprep.subr.mxu0 0.0
  %1595 = vmatpush1.msra.mxu0 0.0
  %1596 = vmatprep.subr.mxu0 0.0
  %1597 = vmatpush1.msra.mxu0 0.0
  %1598 = vmatprep.subr.mxu0 0.0
  %1599 = vmatpush1.msra.mxu0 0.0
  %1600 = vmatprep.subr.mxu0 0.0
  %1601 = vmatpush1.msra.mxu0 0.0
  %1602 = vmatprep.subr.mxu0 0.0
  %1603 = vmatpush1.msra.mxu0 0.0
  %1604 = vmatprep.subr.mxu0 0.0
  %1605 = vmatpush1.msra.mxu0 0.0
  %1606 = vmatprep.subr.mxu0 0.0
  %1607 = vmatpush1.msra.mxu0 0.0
  %1608 = vmatprep.subr.mxu0 0.0
  %1609 = vmatpush1.msra.mxu0 0.0
  %1610 = vmatprep.subr.mxu0 0.0
  %1611 = vmatpush1.msra.mxu0 0.0
  %1612 = vmatprep.subr.mxu0 0.0
  %1613 = vmatpush1.msra.mxu0 0.0
  %1614 = vmatprep.mubr.f32.mxu0 0.0
  %1615 = vmatmul.mubr.f32.gmra.mrb[0].mxu0 %v1376
  %v1616 = vpop.f32.mrb[0].mxu0
  %v1617 = vadd.f32 0.0, %v1616
  %v1618 = vpop.f32.mrb[0].mxu0
  %1619 = vmatprep.mubr.f32.mxu0 0.0
  %1620 = vmatmul.mubr.f32.gmra.mrb[0].mxu0 %v1379
  %v1621 = vpop.f32.mrb[0].mxu0
  %v1622 = vadd.f32 0.0, %v1621
  %v1623 = vpop.f32.mrb[0].mxu0
  %1624 = vmatprep.mubr.f32.mxu0 0.0
  %1625 = vmatmul.mubr.f32.gmra.mrb[0].mxu0 %v1382
  %v1626 = vpop.f32.mrb[0].mxu0
  %v1627 = vadd.f32 0.0, %v1626
  %v1628 = vpop.f32.mrb[0].mxu0
  %1629 = vmatprep.mubr.f32.mxu0 0.0
  %1630 = vmatmul.mubr.f32.gmra.mrb[0].mxu0 %v1385
  %v1631 = vpop.f32.mrb[0].mxu0
  %v1632 = vadd.f32 0.0, %v1631
  %v1633 = vpop.f32.mrb[0].mxu0
  %1634 = vmatprep.mubr.f32.mxu0 0.0
  %1635 = vmatmul.mubr.f32.gmra.mrb[0].mxu0 %v1388
  %v1636 = vpop.f32.mrb[0].mxu0
  %v1637 = vadd.f32 0.0, %v1636
  %v1638 = vpop.f32.mrb[0].mxu0
  %1639 = vmatprep.mubr.f32.mxu0 0.0
  %1640 = vmatmul.mubr.f32.gmra.mrb[0].mxu0 %v1391
  %v1641 = vpop.f32.mrb[0].mxu0
  %v1642 = vadd.f32 0.0, %v1641
  %v1643 = vpop.f32.mrb[0].mxu0
  %1644 = vmatprep.mubr.f32.mxu0 0.0
  %1645 = vmatmul.mubr.f32.gmra.mrb[0].mxu0 %v1394
  %v1646 = vpop.f32.mrb[0].mxu0
  %v1647 = vadd.f32 0.0, %v1646
  %v1648 = vpop.f32.mrb[0].mxu0
  %1649 = vmatprep.mubr.f32.mxu0 0.0
  %1650 = vmatmul.mubr.f32.gmra.mrb[0].mxu0 %v1397
  %v1651 = vpop.f32.mrb[0].mxu0
  %v1652 = vadd.f32 0.0, %v1651
  %v1653 = vpop.f32.mrb[0].mxu0
  %1654 = vmatprep.mubr.f32.mxu0 0.0
  %1655 = vmatmul.mubr.f32.gmra.mrb[0].mxu0 %v1400
  %v1656 = vpop.f32.mrb[0].mxu0
  %v1657 = vadd.f32 0.0, %v1656
  %v1658 = vpop.f32.mrb[0].mxu0
  %1659 = vmatprep.mubr.f32.mxu0 0.0
  %1660 = vmatmul.mubr.f32.gmra.mrb[0].mxu0 %v1403
  %v1661 = vpop.f32.mrb[0].mxu0
  %v1662 = vadd.f32 0.0, %v1661
  %v1663 = vpop.f32.mrb[0].mxu0
  %1664 = vmatprep.mubr.f32.mxu0 0.0
  %1665 = vmatmul.mubr.f32.gmra.mrb[0].mxu0 %v1406
  %v1666 = vpop.f32.mrb[0].mxu0
  %v1667 = vadd.f32 0.0, %v1666
  %v1668 = vpop.f32.mrb[0].mxu0
  %1669 = vmatprep.mubr.f32.mxu0 0.0
  %1670 = vmatmul.mubr.f32.gmra.mrb[0].mxu0 %v1409
  %v1671 = vpop.f32.mrb[0].mxu0
  %v1672 = vadd.f32 0.0, %v1671
  %v1673 = vpop.f32.mrb[0].mxu0
  %1674 = vdwg.mxu0
  %v1675 = vmul.f32 %v1617, %v951
  %v1676 = vmul.f32 %v1622, %v956
  %v1677 = vmul.f32 %v1627, %v961
  %v1678 = vmul.f32 %v1632, %v966
  %v1679 = vmul.f32 %v1637, %v971
  %v1680 = vmul.f32 %v1642, %v976
  %v1681 = vmul.f32 %v1647, %v981
  %v1682 = vmul.f32 %v1652, %v986
  %v1683 = vmul.f32 %v1657, %v991
  %v1684 = vmul.f32 %v1662, %v996
  %v1685 = vmul.f32 %v1667, %v1001
  %v1686 = vmul.f32 %v1672, %v1006
  %v1687 = vadd.f32 %v1536, %v1675
  %v1688 = vadd.f32 %v1537, %v1676
  %v1689 = vadd.f32 %v1538, %v1677
  %v1690 = vadd.f32 %v1539, %v1678
  %v1691 = vadd.f32 %v1540, %v1679
  %v1692 = vadd.f32 %v1541, %v1680
  %v1693 = vadd.f32 %v1542, %v1681
  %v1694 = vadd.f32 %v1543, %v1682
  %v1695 = vadd.f32 %v1544, %v1683
  %v1696 = vadd.f32 %v1545, %v1684
  %v1697 = vadd.f32 %v1546, %v1685
  %v1698 = vadd.f32 %v1547, %v1686
  %v1699 = vmul.f32 %v1351, %v1358
  %v1700 = vmul.f32 %v1353, %v1359
  %1701 = vmatprep.subr.mxu0 0.0
  %1702 = vmatpush1.msra.mxu0 %v1699
  %1703 = vmatprep.subr.mxu0 0.0
  %1704 = vmatpush1.msra.mxu0 %v1700
  %1705 = vmatprep.subr.mxu0 0.0
  %1706 = vmatpush1.msra.mxu0 0.0
  %1707 = vmatprep.subr.mxu0 0.0
  %1708 = vmatpush1.msra.mxu0 0.0
  %1709 = vmatprep.subr.mxu0 0.0
  %1710 = vmatpush1.msra.mxu0 0.0
  %1711 = vmatprep.subr.mxu0 0.0
  %1712 = vmatpush1.msra.mxu0 0.0
  %1713 = vmatprep.subr.mxu0 0.0
  %1714 = vmatpush1.msra.mxu0 0.0
  %1715 = vmatprep.subr.mxu0 0.0
  %1716 = vmatpush1.msra.mxu0 0.0
  %1717 = vmatprep.subr.mxu0 0.0
  %1718 = vmatpush1.msra.mxu0 0.0
  %1719 = vmatprep.subr.mxu0 0.0
  %1720 = vmatpush1.msra.mxu0 0.0
  %1721 = vmatprep.subr.mxu0 0.0
  %1722 = vmatpush1.msra.mxu0 0.0
  %1723 = vmatprep.subr.mxu0 0.0
  %1724 = vmatpush1.msra.mxu0 0.0
  %1725 = vmatprep.subr.mxu0 0.0
  %1726 = vmatpush1.msra.mxu0 0.0
  %1727 = vmatprep.subr.mxu0 0.0
  %1728 = vmatpush1.msra.mxu0 0.0
  %1729 = vmatprep.subr.mxu0 0.0
  %1730 = vmatpush1.msra.mxu0 0.0
  %1731 = vmatprep.subr.mxu0 0.0
  %1732 = vmatpush1.msra.mxu0 0.0
  %1733 = vmatprep.subr.mxu0 0.0
  %1734 = vmatpush1.msra.mxu0 0.0
  %1735 = vmatprep.subr.mxu0 0.0
  %1736 = vmatpush1.msra.mxu0 0.0
  %1737 = vmatprep.subr.mxu0 0.0
  %1738 = vmatpush1.msra.mxu0 0.0
  %1739 = vmatprep.subr.mxu0 0.0
  %1740 = vmatpush1.msra.mxu0 0.0
  %1741 = vmatprep.subr.mxu0 0.0
  %1742 = vmatpush1.msra.mxu0 0.0
  %1743 = vmatprep.subr.mxu0 0.0
  %1744 = vmatpush1.msra.mxu0 0.0
  %1745 = vmatprep.subr.mxu0 0.0
  %1746 = vmatpush1.msra.mxu0 0.0
  %1747 = vmatprep.subr.mxu0 0.0
  %1748 = vmatpush1.msra.mxu0 0.0
  %1749 = vmatprep.subr.mxu0 0.0
  %1750 = vmatpush1.msra.mxu0 0.0
  %1751 = vmatprep.subr.mxu0 0.0
  %1752 = vmatpush1.msra.mxu0 0.0
  %1753 = vmatprep.subr.mxu0 0.0
  %1754 = vmatpush1.msra.mxu0 0.0
  %1755 = vmatprep.subr.mxu0 0.0
  %1756 = vmatpush1.msra.mxu0 0.0
  %1757 = vmatprep.subr.mxu0 0.0
  %1758 = vmatpush1.msra.mxu0 0.0
  %1759 = vmatprep.subr.mxu0 0.0
  %1760 = vmatpush1.msra.mxu0 0.0
  %1761 = vmatprep.subr.mxu0 0.0
  %1762 = vmatpush1.msra.mxu0 0.0
  %1763 = vmatprep.subr.mxu0 0.0
  %1764 = vmatpush1.msra.mxu0 0.0
  %1765 = vmatprep.mubr.f32.mxu0 0.0
  %1766 = vmatmul.mubr.f32.gmra.mrb[0].mxu0 %v1376
  %v1767 = vpop.f32.mrb[0].mxu0
  %v1768 = vadd.f32 0.0, %v1767
  %v1769 = vpop.f32.mrb[0].mxu0
  %1770 = vmatprep.mubr.f32.mxu0 0.0
  %1771 = vmatmul.mubr.f32.gmra.mrb[0].mxu0 %v1379
  %v1772 = vpop.f32.mrb[0].mxu0
  %v1773 = vadd.f32 0.0, %v1772
  %v1774 = vpop.f32.mrb[0].mxu0
  %1775 = vmatprep.mubr.f32.mxu0 0.0
  %1776 = vmatmul.mubr.f32.gmra.mrb[0].mxu0 %v1382
  %v1777 = vpop.f32.mrb[0].mxu0
  %v1778 = vadd.f32 0.0, %v1777
  %v1779 = vpop.f32.mrb[0].mxu0
  %1780 = vmatprep.mubr.f32.mxu0 0.0
  %1781 = vmatmul.mubr.f32.gmra.mrb[0].mxu0 %v1385
  %v1782 = vpop.f32.mrb[0].mxu0
  %v1783 = vadd.f32 0.0, %v1782
  %v1784 = vpop.f32.mrb[0].mxu0
  %1785 = vmatprep.mubr.f32.mxu0 0.0
  %1786 = vmatmul.mubr.f32.gmra.mrb[0].mxu0 %v1388
  %v1787 = vpop.f32.mrb[0].mxu0
  %v1788 = vadd.f32 0.0, %v1787
  %v1789 = vpop.f32.mrb[0].mxu0
  %1790 = vmatprep.mubr.f32.mxu0 0.0
  %1791 = vmatmul.mubr.f32.gmra.mrb[0].mxu0 %v1391
  %v1792 = vpop.f32.mrb[0].mxu0
  %v1793 = vadd.f32 0.0, %v1792
  %v1794 = vpop.f32.mrb[0].mxu0
  %1795 = vmatprep.mubr.f32.mxu0 0.0
  %1796 = vmatmul.mubr.f32.gmra.mrb[0].mxu0 %v1394
  %v1797 = vpop.f32.mrb[0].mxu0
  %v1798 = vadd.f32 0.0, %v1797
  %v1799 = vpop.f32.mrb[0].mxu0
  %1800 = vmatprep.mubr.f32.mxu0 0.0
  %1801 = vmatmul.mubr.f32.gmra.mrb[0].mxu0 %v1397
  %v1802 = vpop.f32.mrb[0].mxu0
  %v1803 = vadd.f32 0.0, %v1802
  %v1804 = vpop.f32.mrb[0].mxu0
  %1805 = vmatprep.mubr.f32.mxu0 0.0
  %1806 = vmatmul.mubr.f32.gmra.mrb[0].mxu0 %v1400
  %v1807 = vpop.f32.mrb[0].mxu0
  %v1808 = vadd.f32 0.0, %v1807
  %v1809 = vpop.f32.mrb[0].mxu0
  %1810 = vmatprep.mubr.f32.mxu0 0.0
  %1811 = vmatmul.mubr.f32.gmra.mrb[0].mxu0 %v1403
  %v1812 = vpop.f32.mrb[0].mxu0
  %v1813 = vadd.f32 0.0, %v1812
  %v1814 = vpop.f32.mrb[0].mxu0
  %1815 = vmatprep.mubr.f32.mxu0 0.0
  %1816 = vmatmul.mubr.f32.gmra.mrb[0].mxu0 %v1406
  %v1817 = vpop.f32.mrb[0].mxu0
  %v1818 = vadd.f32 0.0, %v1817
  %v1819 = vpop.f32.mrb[0].mxu0
  %1820 = vmatprep.mubr.f32.mxu0 0.0
  %1821 = vmatmul.mubr.f32.gmra.mrb[0].mxu0 %v1409
  %v1822 = vpop.f32.mrb[0].mxu0
  %v1823 = vadd.f32 0.0, %v1822
  %v1824 = vpop.f32.mrb[0].mxu0
  %1825 = vdwg.mxu0
  %v1826 = vmul.f32 %v1768, %v1011
  %v1827 = vmul.f32 %v1773, %v1016
  %v1828 = vmul.f32 %v1778, %v1021
  %v1829 = vmul.f32 %v1783, %v1026
  %v1830 = vmul.f32 %v1788, %v1031
  %v1831 = vmul.f32 %v1793, %v1036
  %v1832 = vmul.f32 %v1798, %v1041
  %v1833 = vmul.f32 %v1803, %v1046
  %v1834 = vmul.f32 %v1808, %v1051
  %v1835 = vmul.f32 %v1813, %v1056
  %v1836 = vmul.f32 %v1818, %v1061
  %v1837 = vmul.f32 %v1823, %v1066
  %v1838 = vadd.f32 %v1687, %v1826
  %v1839 = vadd.f32 %v1688, %v1827
  %v1840 = vadd.f32 %v1689, %v1828
  %v1841 = vadd.f32 %v1690, %v1829
  %v1842 = vadd.f32 %v1691, %v1830
  %v1843 = vadd.f32 %v1692, %v1831
  %v1844 = vadd.f32 %v1693, %v1832
  %v1845 = vadd.f32 %v1694, %v1833
  %v1846 = vadd.f32 %v1695, %v1834
  %v1847 = vadd.f32 %v1696, %v1835
  %v1848 = vadd.f32 %v1697, %v1836
  %v1849 = vadd.f32 %v1698, %v1837
  %v1850 = vld [vmem:[%s4] sm:$0xff]
  %v1851 = vld [vmem:[%s4 + $0x8] sm:$0xff]
  %v1852 = vld [vmem:[%s4 + $0x10] sm:$0xf]
  %v1853 = vld [vmem:[%s5] sm:$0xff]
  %v1854 = vld [vmem:[%s5 + $0x8] sm:$0xff]
  %v1855 = vld [vmem:[%s5 + $0x10] sm:$0xf]
  %1857 = vset.pattern.permute.xlu0 0
  %1858 = vperm.xlu0 %1857, %v1853
  %v1859 = vpop.permute.xlu0 %1858
  %1862 = vset.pattern.permute.xlu0 0
  %1863 = vperm.xlu0 %1862, %v1854
  %v1864 = vpop.permute.xlu0 %1863
  %1867 = vset.pattern.permute.xlu0 0
  %1868 = vperm.xlu0 %1867, %v1855
  %v1869 = vpop.permute.xlu0 %1868
  %vm1871 = vcmask 785408
  %v1873 = vsel %vm1871, %v1850, 0
  %v1876 = vsel %vm1871, %v1851, 0
  %v1879 = vsel %vm1871, %v1852, 0
  %1881 = vmatprep.subr.mxu0 0.0
  %1882 = vmatpush1.msra.mxu0 %v1838
  %1883 = vmatprep.subr.mxu0 0.0
  %1884 = vmatpush1.msra.mxu0 %v1839
  %1885 = vmatprep.subr.mxu0 0.0
  %1886 = vmatpush1.msra.mxu0 %v1840
  %1887 = vmatprep.subr.mxu0 0.0
  %1888 = vmatpush1.msra.mxu0 %v1841
  %1889 = vmatprep.subr.mxu0 0.0
  %1890 = vmatpush1.msra.mxu0 %v1842
  %1891 = vmatprep.subr.mxu0 0.0
  %1892 = vmatpush1.msra.mxu0 %v1843
  %1893 = vmatprep.subr.mxu0 0.0
  %1894 = vmatpush1.msra.mxu0 %v1844
  %1895 = vmatprep.subr.mxu0 0.0
  %1896 = vmatpush1.msra.mxu0 %v1845
  %1897 = vmatprep.subr.mxu0 0.0
  %1898 = vmatpush1.msra.mxu0 %v1846
  %1899 = vmatprep.subr.mxu0 0.0
  %1900 = vmatpush1.msra.mxu0 %v1847
  %1901 = vmatprep.subr.mxu0 0.0
  %1902 = vmatpush1.msra.mxu0 %v1848
  %1903 = vmatprep.subr.mxu0 0.0
  %1904 = vmatpush1.msra.mxu0 %v1849
  %1905 = vmatprep.subr.mxu0 0.0
  %1906 = vmatpush1.msra.mxu0 0.0
  %1907 = vmatprep.subr.mxu0 0.0
  %1908 = vmatpush1.msra.mxu0 0.0
  %1909 = vmatprep.subr.mxu0 0.0
  %1910 = vmatpush1.msra.mxu0 0.0
  %1911 = vmatprep.subr.mxu0 0.0
  %1912 = vmatpush1.msra.mxu0 0.0
  %1913 = vmatprep.subr.mxu0 0.0
  %1914 = vmatpush1.msra.mxu0 0.0
  %1915 = vmatprep.subr.mxu0 0.0
  %1916 = vmatpush1.msra.mxu0 0.0
  %1917 = vmatprep.subr.mxu0 0.0
  %1918 = vmatpush1.msra.mxu0 0.0
  %1919 = vmatprep.subr.mxu0 0.0
  %1920 = vmatpush1.msra.mxu0 0.0
  %1921 = vmatprep.subr.mxu0 0.0
  %1922 = vmatpush1.msra.mxu0 0.0
  %1923 = vmatprep.subr.mxu0 0.0
  %1924 = vmatpush1.msra.mxu0 0.0
  %1925 = vmatprep.subr.mxu0 0.0
  %1926 = vmatpush1.msra.mxu0 0.0
  %1927 = vmatprep.subr.mxu0 0.0
  %1928 = vmatpush1.msra.mxu0 0.0
  %1929 = vmatprep.subr.mxu0 0.0
  %1930 = vmatpush1.msra.mxu0 0.0
  %1931 = vmatprep.subr.mxu0 0.0
  %1932 = vmatpush1.msra.mxu0 0.0
  %1933 = vmatprep.subr.mxu0 0.0
  %1934 = vmatpush1.msra.mxu0 0.0
  %1935 = vmatprep.subr.mxu0 0.0
  %1936 = vmatpush1.msra.mxu0 0.0
  %1937 = vmatprep.subr.mxu0 0.0
  %1938 = vmatpush1.msra.mxu0 0.0
  %1939 = vmatprep.subr.mxu0 0.0
  %1940 = vmatpush1.msra.mxu0 0.0
  %1941 = vmatprep.subr.mxu0 0.0
  %1942 = vmatpush1.msra.mxu0 0.0
  %1943 = vmatprep.subr.mxu0 0.0
  %1944 = vmatpush1.msra.mxu0 0.0
  %1945 = vmatprep.mubr.f32.mxu0 0.0
  %1946 = vmatmul.mubr.f32.gmra.mrb[0].mxu0 %v1873
  %v1947 = vpop.f32.mrb[0].mxu0
  %v1948 = vadd.f32 %v1859, %v1947
  %v1949 = vpop.f32.mrb[0].mxu0
  %1950 = vmatprep.mubr.f32.mxu0 0.0
  %1951 = vmatmul.mubr.f32.gmra.mrb[0].mxu0 %v1876
  %v1952 = vpop.f32.mrb[0].mxu0
  %v1953 = vadd.f32 %v1864, %v1952
  %v1954 = vpop.f32.mrb[0].mxu0
  %1955 = vmatprep.mubr.f32.mxu0 0.0
  %1956 = vmatmul.mubr.f32.gmra.mrb[0].mxu0 %v1879
  %v1957 = vpop.f32.mrb[0].mxu0
  %v1958 = vadd.f32 %v1869, %v1957
  %v1959 = vpop.f32.mrb[0].mxu0
  %1960 = vdwg.mxu0
  %1961 = vst [vmem:[%s6] sm:$0xff] %v1948
  %1962 = vst [vmem:[%s6 + $0x8] sm:$0xff] %v1953
  %1963 = vst [vmem:[%s6 + $0x10] sm:$0xf] %v1958
  // Predicated region
  $region26: #{cnn_patch_attention.1} parent=0 // pred_check
    _
  $region27: #{cnn_patch_attention.1} parent=0 // pred_check_branch
    %1965 = sbr.rel (0) target = $region29
  $region28: #{cnn_patch_attention.1} parent=0 // pred_region
    _
  $region29: #{cnn_patch_attention.1} parent=0 // pred_fallthru
    _
  // Predicated region
  $region30: #{cnn_patch_attention.1} parent=0 // pred_check
    _
  $region31: #{cnn_patch_attention.1} parent=0 // pred_check_branch
    %1967 = sbr.rel (0) target = $region33
  $region32: #{cnn_patch_attention.1} parent=0 // pred_region
    _
  $region33: #{cnn_patch_attention.1} parent=0 // pred_fallthru
    _

</llo_original>
